<compile_context>
chip_gen: v6e
topology: v6e:2x2x1
jax: 0.10.0
libtpu: 0.0.40
codegen_flags: <defaults>
</compile_context>

<pallas_src>
import math

import numpy as np
import jax
import jax.numpy as jnp
from jax.experimental import pallas as pl
from jax.experimental.pallas import tpu as pltpu

# ----- model hyper-parameters (small, consistent with the module) -----------
N = 2          # batch
nCH = 2        # complex input channels (must equal 2: final x*h demix)
W = 3          # conv kernel width (odd, use_pad=True -> 'same')
H = 16         # hidden channels
L = 3          # three complex conv layers
T = 16         # time length
PAD = (W - 1) // 2

# HIGHEST keeps the kernel bit-comparable to the f32 reference (1e-4 check).
# TODO(synk): on v6e/v7x, dropping to DEFAULT / bf16 matmul operands cuts MXU
# passes ~3x if the accuracy budget allows (loosen the allclose tolerance).
_PREC = jax.lax.Precision.HIGHEST


# --------------------------------- kernel ------------------------------------
def _make_kernel(nb, nch, w, t):
  """Single-step kernel: the whole batch is folded onto the lane axis
  (nt = nb*t); activations stay (C, nt) lane-dense throughout."""
  nt = nb * t
  pad = (w - 1) // 2

  def kernel(x_ref, w1_ref, w2_ref, w3_ref, b1_ref, b2_ref, b3_ref, mask_ref,
             out_ref):
    # x_ref: (2*nch, nt) lane-dense slab, real channels first.
    mask = mask_ref[...]                           # (w, nt), loaded once

    def taps(h):
      """h: (C, nt) -> (C*w, nt): the w 'same'-conv shifted views, tap-major
      along sublanes.  One shifted view + one VPU mask-multiply per
      off-centre tap over the WHOLE lane slab (no per-batch slicing).
      The precomputed lane mask zeroes both the conv 'same'-padding lanes and
      the cross-batch wrap lanes, so a plain roll is exact.
      TODO(synk): switch to pltpu.roll (XLU slot) if the lane slab ever grows
      to a 128-lane multiple; at 32 lanes this is a single-vreg shuffle."""
      parts = []
      for k in range(w):
        d = k - pad
        if d == 0:
          parts.append(h)
        else:
          r = jnp.roll(h, shift=(-d) % nt, axis=1)   # y[:, j] = h[:, j + d]
          parts.append(r * mask[k:k + 1, :])
      return jnp.concatenate(parts, axis=0)

    x = x_ref[...]                                   # (2*nch, nt)

    # ---- layer 1: one block-complex matmul + bias (VPU add) + relu ---------
    h1 = jnp.dot(w1_ref[...], taps(x),
                 preferred_element_type=jnp.float32, precision=_PREC)
    h1 = jnp.maximum(h1 + b1_ref[...], 0.0)          # (2H, nt)

    # ---- layer 2 ------------------------------------------------------------
    h2 = jnp.dot(w2_ref[...], taps(h1),
                 preferred_element_type=jnp.float32, precision=_PREC)
    h2 = jnp.maximum(h2 + b2_ref[...], 0.0)          # (2H, nt)

    # ---- layer 3 -> 2 complex output channels -------------------------------
    h3 = jnp.dot(w3_ref[...], taps(h2),
                 preferred_element_type=jnp.float32, precision=_PREC)
    h3 = h3 + b3_ref[...]                            # (4, nt)
    h3r, h3i = h3[:2], h3[2:]

    # ---- demixing: Y = sum_ch(x * h) with complex-multiply semantics --------
    # (requires nch == 2 so that h3r/h3i align with xr/xi); pure sublane slices
    xr, xi = x[:nch], x[nch:]
    yr = jnp.sum(xr * h3r - xi * h3i, axis=0, keepdims=True)   # (1, nt)
    yi = jnp.sum(xr * h3i + xi * h3r, axis=0, keepdims=True)   # (1, nt)
    y = jnp.concatenate([yr, yi], axis=0)                      # (2, nt)

    # Emit directly as (N, 2, T): no wrapper-side transpose needed.
    for b in range(nb):
      out_ref[b, :, :] = y[:, b * t:(b + 1) * t].astype(out_ref.dtype)

  return kernel


# -------------------------------- wrapper ------------------------------------
def _block_weights(wr, wi):
  """torch-layout wr/wi: (Cout, Cin, W) -> (2*Cout, 2*Cin*W) block-complex
  [[Wr,-Wi],[Wi,Wr]] weights, im2col'd tap-major.  K stays a multiple of 8;
  the bias is applied in-kernel as a broadcast add (no ones row)."""
  blocks = []
  for k in range(wr.shape[2]):
    top = jnp.concatenate([wr[:, :, k], -wi[:, :, k]], axis=1)   # (Cout, 2Cin)
    bot = jnp.concatenate([wi[:, :, k], wr[:, :, k]], axis=1)
    blocks.append(jnp.concatenate([top, bot], axis=0))           # (2Cout, 2Cin)
  return jnp.concatenate(blocks, axis=1).astype(jnp.float32)     # (2Cout, 2CinW)


def _block_bias(br, bi):
  """Combined complex bias (br-bi ; br+bi) as a (2*Cout, 1) column for a
  broadcast VPU add after the matmul."""
  return jnp.concatenate([br - bi, br + bi])[:, None].astype(jnp.float32)


def _tap_masks(w, nb, t):
  """(w, nb*t) f32 lane masks: 1 where the shifted tap stays inside its own
  batch segment ('same' padding + batch boundaries -> 0)."""
  pad = (w - 1) // 2
  pos = np.arange(nb * t) % t
  rows = [((pos + (k - pad) >= 0) & (pos + (k - pad) < t)).astype(np.float32)
          for k in range(w)]
  return jnp.asarray(np.stack(rows))


@jax.jit
def complex_deep_conv1d(x, params):
  """x: (N, 2*nCH, T) float32 (real channels first).  Returns (N, 2, T)."""
  (w1r, b1r, w1i, b1i, w2r, b2r, w2i, b2i, w3r, b3r, w3i, b3i) = params
  n, c2, t = x.shape
  nch = c2 // 2
  assert nch == 2, "final x*h demix requires nCH == 2 (layer-3 Cout == nCH)"
  w = w1r.shape[2]

  w1a = _block_weights(w1r, w1i)     # (2H, 2*nch*W)
  w2a = _block_weights(w2r, w2i)     # (2H, 2*H*W)
  w3a = _block_weights(w3r, w3i)     # (4,  2*H*W)
  b1a = _block_bias(b1r, b1i)        # (2H, 1)
  b2a = _block_bias(b2r, b2i)        # (2H, 1)
  b3a = _block_bias(b3r, b3i)        # (4, 1)
  mask = _tap_masks(w, n, t)         # (W, N*T)

  # Lane-dense input slab: (2*nch, N*T), real channels first.
  x2 = x.astype(jnp.float32).transpose(1, 0, 2).reshape(c2, n * t)

  # Total work ~10 KFLOPs / ~20 KB: run everything in ONE step on every TPU
  # generation (VMEM footprint < 100 KB; splitting is pure per-step overhead).
  # TODO(synk): if N*T grows into thousands of lanes, add a "parallel" grid
  # axis over batch so v7x's two TensorCores can share it.
  vmem = pl.BlockSpec(memory_space=pltpu.MemorySpace.VMEM)
  out = pl.pallas_call(
      _make_kernel(n, nch, w, t),
      out_shape=jax.ShapeDtypeStruct((n, 2, t), jnp.float32),
      in_specs=[vmem] * 8,
      out_specs=vmem,
  )(x2, w1a, w2a, w3a, b1a, b2a, b3a, mask)
  return out


# ------------------------- pure-JAX reference --------------------------------
def _conv1d_ref(x, w, b):
  """x: (N, Cin, T); w: (Cout, Cin, W); b: (Cout,). 'same' conv."""
  xp = jnp.pad(x, ((0, 0), (0, 0), (PAD, PAD)))
  out = jnp.zeros((x.shape[0], w.shape[0], x.shape[2]), jnp.float32)
  for k in range(w.shape[2]):
    out = out + jnp.einsum('oc,nct->not', w[:, :, k],
                           xp[:, :, k:k + x.shape[2]], precision=_PREC)
  return out + b[None, :, None]


def _cconv_ref(xr, xi, wr, br, wi, bi):
  hr = _conv1d_ref(xr, wr, br) - _conv1d_ref(xi, wi, bi)
  hi = _conv1d_ref(xi, wr, br) + _conv1d_ref(xr, wi, bi)
  return hr, hi


def ref_forward(x, params):
  (w1r, b1r, w1i, b1i, w2r, b2r, w2i, b2i, w3r, b3r, w3i, b3i) = params
  xr, xi = jnp.split(x, 2, axis=1)
  h1r, h1i = _cconv_ref(xr, xi, w1r, b1r, w1i, b1i)
  h1r, h1i = jax.nn.relu(h1r), jax.nn.relu(h1i)
  h2r, h2i = _cconv_ref(h1r, h1i, w2r, b2r, w2i, b2i)
  h2r, h2i = jax.nn.relu(h2r), jax.nn.relu(h2i)
  h3r, h3i = _cconv_ref(h2r, h2i, w3r, b3r, w3i, b3i)
  yrr = (xr * h3r).sum(1)
  yri = (xr * h3i).sum(1)
  yir = (xi * h3r).sum(1)
  yii = (xi * h3i).sum(1)
  yr = yrr - yii
  yi = yri + yir
  # torch.squeeze on (N,2,T) with N,T>1 is a no-op
  return jnp.concatenate([yr[:, None, :], yi[:, None, :]], axis=1)


# ------------------------- parameter init ------------------------------------
def init_params(key):
  """Deterministic Conv1d-style (kaiming-uniform-ish) init. torch layout
  (Cout, Cin, W) for weights, (Cout,) for biases."""
  shapes = [(H, nCH), (H, nCH),   # cnn1 real / imag
            (H, H),   (H, H),     # cnn2 real / imag
            (2, H),   (2, H)]     # cnn3 real / imag
  params = []
  for (cout, cin) in shapes:
    key, kw_, kb_ = jax.random.split(key, 3)
    bound = 1.0 / math.sqrt(cin * W)
    wgt = jax.random.uniform(kw_, (cout, cin, W), minval=-bound, maxval=bound,
                             dtype=jnp.float32)
    b = jax.random.uniform(kb_, (cout,), minval=-bound, maxval=bound,
                           dtype=jnp.float32)
    params += [wgt, b]
  # order: w1r,b1r,w1i,b1i, w2r,b2r,w2i,b2i, w3r,b3r,w3i,b3i
  return tuple(params)


if __name__ == "__main__":
  key = jax.random.PRNGKey(0)
  k_x, k_p = jax.random.split(key)
  x = jax.random.normal(k_x, (N, 2 * nCH, T), dtype=jnp.float32)
  params = init_params(k_p)

  out = complex_deep_conv1d(x, params)
  out = jax.block_until_ready(out)

  ref = ref_forward(x, params)
  assert out.shape == (N, 2, T)
  err = float(jnp.max(jnp.abs(out - ref)))
  assert jnp.allclose(out, ref, atol=1e-4, rtol=1e-4), err
  print("KERNEL_OK")
</pallas_src>

<mosaic_0001>
module attributes {stable_mosaic.version = 11 : i64} {
  func.func @kernel(%arg0: memref<4x32xf32, #tpu.memory_space<vmem>>, %arg1: memref<32x12xf32, #tpu.memory_space<vmem>>, %arg2: memref<32x96xf32, #tpu.memory_space<vmem>>, %arg3: memref<4x96xf32, #tpu.memory_space<vmem>>, %arg4: memref<32x1xf32, #tpu.memory_space<vmem>>, %arg5: memref<32x1xf32, #tpu.memory_space<vmem>>, %arg6: memref<4x1xf32, #tpu.memory_space<vmem>>, %arg7: memref<3x32xf32, #tpu.memory_space<vmem>>, %arg8: memref<2x2x16xf32, #tpu.memory_space<vmem>>) attributes {dimension_semantics = [], scalar_prefetch = 0 : i64, scratch_operands = 0 : i64, tpu.core_type = #tpu.core_type<tc>} {
    %c0 = arith.constant 0 : index
    %c0_0 = arith.constant 0 : index
    %0 = vector.load %arg7[%c0, %c0_0] : memref<3x32xf32, #tpu.memory_space<vmem>>, vector<3x32xf32>
    %c0_1 = arith.constant 0 : index
    %c0_2 = arith.constant 0 : index
    %1 = vector.load %arg0[%c0_1, %c0_2] : memref<4x32xf32, #tpu.memory_space<vmem>>, vector<4x32xf32>
    %c0_3 = arith.constant 0 : index
    %c0_4 = arith.constant 0 : index
    %2 = vector.load %arg1[%c0_3, %c0_4] : memref<32x12xf32, #tpu.memory_space<vmem>>, vector<32x12xf32>
    %3 = vector.extract_strided_slice %1 {offsets = [0, 31], sizes = [4, 1], strides = [1, 1]} : vector<4x32xf32> to vector<4x1xf32>
    %4 = vector.extract_strided_slice %1 {offsets = [0, 0], sizes = [4, 31], strides = [1, 1]} : vector<4x32xf32> to vector<4x31xf32>
    %5 = tpu.concatenate %3, %4 in 1 : vector<4x1xf32>, vector<4x31xf32> -> vector<4x32xf32>
    %6 = vector.extract_strided_slice %0 {offsets = [0, 0], sizes = [1, 32], strides = [1, 1]} : vector<3x32xf32> to vector<1x32xf32>
    %7 = vector.broadcast %6 : vector<1x32xf32> to vector<4x32xf32>
    %8 = arith.mulf %5, %7 : vector<4x32xf32>
    %9 = vector.extract_strided_slice %1 {offsets = [0, 1], sizes = [4, 31], strides = [1, 1]} : vector<4x32xf32> to vector<4x31xf32>
    %10 = vector.extract_strided_slice %1 {offsets = [0, 0], sizes = [4, 1], strides = [1, 1]} : vector<4x32xf32> to vector<4x1xf32>
    %11 = tpu.concatenate %9, %10 in 1 : vector<4x31xf32>, vector<4x1xf32> -> vector<4x32xf32>
    %12 = vector.extract_strided_slice %0 {offsets = [2, 0], sizes = [1, 32], strides = [1, 1]} : vector<3x32xf32> to vector<1x32xf32>
    %13 = vector.broadcast %12 : vector<1x32xf32> to vector<4x32xf32>
    %14 = arith.mulf %11, %13 : vector<4x32xf32>
    %15 = tpu.concatenate %8, %1, %14 in 0 : vector<4x32xf32>, vector<4x32xf32>, vector<4x32xf32> -> vector<12x32xf32>
    %cst = arith.constant dense<0.000000e+00> : vector<32x32xf32>
    %16 = tpu.matmul %2, %15, %cst {dimension_numbers = #tpu.dot_dimension_numbers<[1], [0], [0], [1], [0, 0, 1, 1], [], []>, precision = #tpu.contract_precision<fp32>} : vector<32x12xf32>, vector<12x32xf32>, vector<32x32xf32> -> vector<32x32xf32>
    %c0_5 = arith.constant 0 : index
    %c0_6 = arith.constant 0 : index
    %17 = vector.load %arg4[%c0_5, %c0_6] : memref<32x1xf32, #tpu.memory_space<vmem>>, vector<32x1xf32>
    %18 = vector.broadcast %17 : vector<32x1xf32> to vector<32x32xf32>
    %19 = arith.addf %16, %18 : vector<32x32xf32>
    %cst_7 = arith.constant 0.000000e+00 : f32
    %20 = vector.broadcast %cst_7 : f32 to vector<32x32xf32>
    %21 = arith.maximumf %19, %20 : vector<32x32xf32>
    %c0_8 = arith.constant 0 : index
    %c0_9 = arith.constant 0 : index
    %22 = vector.load %arg2[%c0_8, %c0_9] : memref<32x96xf32, #tpu.memory_space<vmem>>, vector<32x96xf32>
    %23 = vector.extract_strided_slice %21 {offsets = [0, 31], sizes = [32, 1], strides = [1, 1]} : vector<32x32xf32> to vector<32x1xf32>
    %24 = vector.extract_strided_slice %21 {offsets = [0, 0], sizes = [32, 31], strides = [1, 1]} : vector<32x32xf32> to vector<32x31xf32>
    %25 = tpu.concatenate %23, %24 in 1 : vector<32x1xf32>, vector<32x31xf32> -> vector<32x32xf32>
    %26 = vector.extract_strided_slice %0 {offsets = [0, 0], sizes = [1, 32], strides = [1, 1]} : vector<3x32xf32> to vector<1x32xf32>
    %27 = vector.broadcast %26 : vector<1x32xf32> to vector<32x32xf32>
    %28 = arith.mulf %25, %27 : vector<32x32xf32>
    %29 = vector.extract_strided_slice %21 {offsets = [0, 1], sizes = [32, 31], strides = [1, 1]} : vector<32x32xf32> to vector<32x31xf32>
    %30 = vector.extract_strided_slice %21 {offsets = [0, 0], sizes = [32, 1], strides = [1, 1]} : vector<32x32xf32> to vector<32x1xf32>
    %31 = tpu.concatenate %29, %30 in 1 : vector<32x31xf32>, vector<32x1xf32> -> vector<32x32xf32>
    %32 = vector.extract_strided_slice %0 {offsets = [2, 0], sizes = [1, 32], strides = [1, 1]} : vector<3x32xf32> to vector<1x32xf32>
    %33 = vector.broadcast %32 : vector<1x32xf32> to vector<32x32xf32>
    %34 = arith.mulf %31, %33 : vector<32x32xf32>
    %35 = tpu.concatenate %28, %21, %34 in 0 : vector<32x32xf32>, vector<32x32xf32>, vector<32x32xf32> -> vector<96x32xf32>
    %cst_10 = arith.constant dense<0.000000e+00> : vector<32x32xf32>
    %36 = tpu.matmul %22, %35, %cst_10 {dimension_numbers = #tpu.dot_dimension_numbers<[1], [0], [0], [1], [0, 0, 1, 1], [], []>, precision = #tpu.contract_precision<fp32>} : vector<32x96xf32>, vector<96x32xf32>, vector<32x32xf32> -> vector<32x32xf32>
    %c0_11 = arith.constant 0 : index
    %c0_12 = arith.constant 0 : index
    %37 = vector.load %arg5[%c0_11, %c0_12] : memref<32x1xf32, #tpu.memory_space<vmem>>, vector<32x1xf32>
    %38 = vector.broadcast %37 : vector<32x1xf32> to vector<32x32xf32>
    %39 = arith.addf %36, %38 : vector<32x32xf32>
    %cst_13 = arith.constant 0.000000e+00 : f32
    %40 = vector.broadcast %cst_13 : f32 to vector<32x32xf32>
    %41 = arith.maximumf %39, %40 : vector<32x32xf32>
    %c0_14 = arith.constant 0 : index
    %c0_15 = arith.constant 0 : index
    %42 = vector.load %arg3[%c0_14, %c0_15] : memref<4x96xf32, #tpu.memory_space<vmem>>, vector<4x96xf32>
    %43 = vector.extract_strided_slice %41 {offsets = [0, 31], sizes = [32, 1], strides = [1, 1]} : vector<32x32xf32> to vector<32x1xf32>
    %44 = vector.extract_strided_slice %41 {offsets = [0, 0], sizes = [32, 31], strides = [1, 1]} : vector<32x32xf32> to vector<32x31xf32>
    %45 = tpu.concatenate %43, %44 in 1 : vector<32x1xf32>, vector<32x31xf32> -> vector<32x32xf32>
    %46 = vector.extract_strided_slice %0 {offsets = [0, 0], sizes = [1, 32], strides = [1, 1]} : vector<3x32xf32> to vector<1x32xf32>
    %47 = vector.broadcast %46 : vector<1x32xf32> to vector<32x32xf32>
    %48 = arith.mulf %45, %47 : vector<32x32xf32>
    %49 = vector.extract_strided_slice %41 {offsets = [0, 1], sizes = [32, 31], strides = [1, 1]} : vector<32x32xf32> to vector<32x31xf32>
    %50 = vector.extract_strided_slice %41 {offsets = [0, 0], sizes = [32, 1], strides = [1, 1]} : vector<32x32xf32> to vector<32x1xf32>
    %51 = tpu.concatenate %49, %50 in 1 : vector<32x31xf32>, vector<32x1xf32> -> vector<32x32xf32>
    %52 = vector.extract_strided_slice %0 {offsets = [2, 0], sizes = [1, 32], strides = [1, 1]} : vector<3x32xf32> to vector<1x32xf32>
    %53 = vector.broadcast %52 : vector<1x32xf32> to vector<32x32xf32>
    %54 = arith.mulf %51, %53 : vector<32x32xf32>
    %55 = tpu.concatenate %48, %41, %54 in 0 : vector<32x32xf32>, vector<32x32xf32>, vector<32x32xf32> -> vector<96x32xf32>
    %cst_16 = arith.constant dense<0.000000e+00> : vector<4x32xf32>
    %56 = tpu.matmul %42, %55, %cst_16 {dimension_numbers = #tpu.dot_dimension_numbers<[1], [0], [0], [1], [0, 0, 1, 1], [], []>, precision = #tpu.contract_precision<fp32>} : vector<4x96xf32>, vector<96x32xf32>, vector<4x32xf32> -> vector<4x32xf32>
    %c0_17 = arith.constant 0 : index
    %c0_18 = arith.constant 0 : index
    %57 = vector.load %arg6[%c0_17, %c0_18] : memref<4x1xf32, #tpu.memory_space<vmem>>, vector<4x1xf32>
    %58 = vector.broadcast %57 : vector<4x1xf32> to vector<4x32xf32>
    %59 = arith.addf %56, %58 : vector<4x32xf32>
    %60 = vector.extract_strided_slice %59 {offsets = [0, 0], sizes = [2, 32], strides = [1, 1]} : vector<4x32xf32> to vector<2x32xf32>
    %61 = vector.extract_strided_slice %59 {offsets = [2, 0], sizes = [2, 32], strides = [1, 1]} : vector<4x32xf32> to vector<2x32xf32>
    %62 = vector.extract_strided_slice %1 {offsets = [0, 0], sizes = [2, 32], strides = [1, 1]} : vector<4x32xf32> to vector<2x32xf32>
    %63 = vector.extract_strided_slice %1 {offsets = [2, 0], sizes = [2, 32], strides = [1, 1]} : vector<4x32xf32> to vector<2x32xf32>
    %64 = arith.mulf %62, %60 : vector<2x32xf32>
    %65 = arith.mulf %63, %61 : vector<2x32xf32>
    %66 = arith.subf %64, %65 : vector<2x32xf32>
    %cst_19 = arith.constant dense<0.000000e+00> : vector<32xf32>
    %67 = vector.multi_reduction <add>, %66, %cst_19 [0] : vector<2x32xf32> to vector<32xf32>
    %68 = vector.shape_cast %67 : vector<32xf32> to vector<1x32xf32>
    %69 = arith.mulf %62, %61 : vector<2x32xf32>
    %70 = arith.mulf %63, %60 : vector<2x32xf32>
    %71 = arith.addf %69, %70 : vector<2x32xf32>
    %cst_20 = arith.constant dense<0.000000e+00> : vector<32xf32>
    %72 = vector.multi_reduction <add>, %71, %cst_20 [0] : vector<2x32xf32> to vector<32xf32>
    %73 = vector.shape_cast %72 : vector<32xf32> to vector<1x32xf32>
    %74 = tpu.concatenate %68, %73 in 0 : vector<1x32xf32>, vector<1x32xf32> -> vector<2x32xf32>
    %75 = vector.extract_strided_slice %74 {offsets = [0, 0], sizes = [2, 16], strides = [1, 1]} : vector<2x32xf32> to vector<2x16xf32>
    %c0_21 = arith.constant 0 : index
    %c0_22 = arith.constant 0 : index
    %c0_23 = arith.constant 0 : index
    %76 = vector.load %arg8[%c0_21, %c0_22, %c0_23] : memref<2x2x16xf32, #tpu.memory_space<vmem>>, vector<1x2x16xf32>
    %77 = vector.shape_cast %76 : vector<1x2x16xf32> to vector<2x16xf32>
    %78 = vector.shape_cast %75 : vector<2x16xf32> to vector<1x2x16xf32>
    tpu.vector_store %arg8[%c0_21, %c0_22, %c0_23], %78 {strides = array<i32>} : memref<2x2x16xf32, #tpu.memory_space<vmem>>, vector<1x2x16xf32>,
    %79 = vector.extract_strided_slice %74 {offsets = [0, 16], sizes = [2, 16], strides = [1, 1]} : vector<2x32xf32> to vector<2x16xf32>
    %c1 = arith.constant 1 : index
    %c0_24 = arith.constant 0 : index
    %c0_25 = arith.constant 0 : index
    %80 = vector.load %arg8[%c1, %c0_24, %c0_25] : memref<2x2x16xf32, #tpu.memory_space<vmem>>, vector<1x2x16xf32>
    %81 = vector.shape_cast %80 : vector<1x2x16xf32> to vector<2x16xf32>
    %82 = vector.shape_cast %79 : vector<2x16xf32> to vector<1x2x16xf32>
    tpu.vector_store %arg8[%c1, %c0_24, %c0_25], %82 {strides = array<i32>} : memref<2x2x16xf32, #tpu.memory_space<vmem>>, vector<1x2x16xf32>,
    return
  }
}

</mosaic_0001>

<llo_original>
// kernel: complex_deep_conv1d.1
$region0: #{complex_deep_conv1d.1}
  #allocation0 [shape = 'u32[]', space=smem, size = 0x4, offset = 0x4, fixed_abs, tag = 'smem constant byte address 0x4 - core index']
  #allocation1 [shape = 'u32[144,128]{1,0:T(1,128)}', space=vmem, size = 0x12000, scoped, tag = 'internal scratch']
  %s0 = inlined_call_operand.vmem [shape: f32[4,32], index: 0, kind: input, shape index: {}]
  %s1 = inlined_call_operand.vmem [shape: f32[32,12], index: 1, kind: input, shape index: {}]
  %s2 = inlined_call_operand.vmem [shape: f32[32,96], index: 2, kind: input, shape index: {}]
  %s3 = inlined_call_operand.vmem [shape: f32[4,96], index: 3, kind: input, shape index: {}]
  %s4 = inlined_call_operand.vmem [shape: f32[32,1], index: 4, kind: input, shape index: {}]
  %s5 = inlined_call_operand.vmem [shape: f32[32,1], index: 5, kind: input, shape index: {}]
  %s6 = inlined_call_operand.vmem [shape: f32[4,1], index: 6, kind: input, shape index: {}]
  %s7 = inlined_call_operand.vmem [shape: f32[3,32], index: 7, kind: input, shape index: {}]
  %s8 = inlined_call_operand.hbm [shape: f32[2,2,16], index: 8, kind: output, shape index: {}]
  %s9 = sld [smem:[#allocation0]]
  $region42: #{complex_deep_conv1d.1} parent=0
    _
  %s11 = ssub.s32 1, %s9
  %s12 = scalar_select 0, %s11, %s9
  $region1: #{complex_deep_conv1d.1} parent=0
    #allocation2 [shape = 'u8[2048]{0}', space=vmem, size = 0x800, scoped, tag = 'output window, operand 0, single buffered']
    #allocation3 [shape = 's32[1]{0}', space=sflag, size = 0x4, scoped, tag = 'scoped memory for complex_deep_conv1d.1']
    %13 = vsyncpa [#allocation3], 0
    // Predicated region
    $region2: #{complex_deep_conv1d.1} parent=1 // pred_check
      _
    $region3: #{complex_deep_conv1d.1} parent=1 // pred_check_branch
      %15 = sbr.rel (0) target = $region5
    $region4: #{complex_deep_conv1d.1} parent=1 // pred_region
      _
    $region5: #{complex_deep_conv1d.1} parent=1 // pred_fallthru
      _
    // Predicated region
    $region6: #{complex_deep_conv1d.1} parent=1 // pred_check
      _
    $region7: #{complex_deep_conv1d.1} parent=1 // pred_check_branch
      %17 = sbr.rel (0) target = $region9
    $region8: #{complex_deep_conv1d.1} parent=1 // pred_region
      _
    $region9: #{complex_deep_conv1d.1} parent=1 // pred_fallthru
      _
    // Predicated region
    $region10: #{complex_deep_conv1d.1} parent=1 // pred_check
      _
    $region11: #{complex_deep_conv1d.1} parent=1 // pred_check_branch
      %19 = sbr.rel (0) target = $region13
    $region12: #{complex_deep_conv1d.1} parent=1 // pred_region
      _
    $region13: #{complex_deep_conv1d.1} parent=1 // pred_fallthru
      _
    // Predicated region
    $region14: #{complex_deep_conv1d.1} parent=1 // pred_check
      _
    $region15: #{complex_deep_conv1d.1} parent=1 // pred_check_branch
      %21 = sbr.rel (0) target = $region17
    $region16: #{complex_deep_conv1d.1} parent=1 // pred_region
      _
    $region17: #{complex_deep_conv1d.1} parent=1 // pred_fallthru
      _
    // Predicated region
    $region18: #{complex_deep_conv1d.1} parent=1 // pred_check
      _
    $region19: #{complex_deep_conv1d.1} parent=1 // pred_check_branch
      %23 = sbr.rel (0) target = $region21
    $region20: #{complex_deep_conv1d.1} parent=1 // pred_region
      _
    $region21: #{complex_deep_conv1d.1} parent=1 // pred_fallthru
      _
    // Predicated region
    $region22: #{complex_deep_conv1d.1} parent=1 // pred_check
      _
    $region23: #{complex_deep_conv1d.1} parent=1 // pred_check_branch
      %25 = sbr.rel (0) target = $region25
    $region24: #{complex_deep_conv1d.1} parent=1 // pred_region
      _
    $region25: #{complex_deep_conv1d.1} parent=1 // pred_fallthru
      _
    // Predicated region
    $region26: #{complex_deep_conv1d.1} parent=1 // pred_check
      _
    $region27: #{complex_deep_conv1d.1} parent=1 // pred_check_branch
      %27 = sbr.rel (0) target = $region29
    $region28: #{complex_deep_conv1d.1} parent=1 // pred_region
      _
    $region29: #{complex_deep_conv1d.1} parent=1 // pred_fallthru
      _
    // Predicated region
    $region30: #{complex_deep_conv1d.1} parent=1 // pred_check
      _
    $region31: #{complex_deep_conv1d.1} parent=1 // pred_check_branch
      %29 = sbr.rel (0) target = $region33
    $region32: #{complex_deep_conv1d.1} parent=1 // pred_region
      _
    $region33: #{complex_deep_conv1d.1} parent=1 // pred_fallthru
      _
    %v30 = vld [vmem:[%s7] sm:$0x7]
    %v31 = vld [vmem:[%s0] sm:$0xf]
    %v32 = vld [vmem:[%s1] sm:$0xff]
    %v33 = vld [vmem:[%s1 + $0x8] sm:$0xff]
    %v34 = vld [vmem:[%s1 + $0x10] sm:$0xff]
    %v35 = vld [vmem:[%s1 + $0x18] sm:$0xff]
    %37 = vrot.lane.b32.xlu0 %v31, 97
    %v38 = vpop.permute.xlu0 %37
    %40 = vrot.lane.b32.xlu0 %v31, 1
    %v41 = vpop.permute.xlu0 %40
    %vm43 = vcmask 7168
    %v44 = vsel %vm43, %v38, %v41
    %v45 = vlaneseq
    %v46 = vshrl.u32 %v45, 7
    %v47 = vsub.s32 0, %v46
    %v48 = vrot.slane %v30, %v47
    %v49 = vmul.f32 %v44, %v48
    %50 = vrot.lane.b32.xlu0 %v31, 127
    %v51 = vpop.permute.xlu0 %50
    %53 = vrot.lane.b32.xlu0 %v31, 31
    %v54 = vpop.permute.xlu0 %53
    %vm56 = vcmask 252928
    %v57 = vsel %vm56, %v51, %v54
    %v58 = vlaneseq
    %v59 = vshrl.u32 %v58, 7
    %v60 = vsub.s32 2, %v59
    %v61 = vrot.slane %v30, %v60
    %v62 = vmul.f32 %v57, %v61
    %v63 = vrot.slane %v31, 4
    %vm65 = vcmask 1043456
    %v66 = vsel %vm65, %v49, %v63
    %v67 = vld [vmem:[%s4] sm:$0xff]
    %v68 = vld [vmem:[%s4 + $0x8] sm:$0xff]
    %v69 = vld [vmem:[%s4 + $0x10] sm:$0xff]
    %v70 = vld [vmem:[%s4 + $0x18] sm:$0xff]
    %72 = vset.pattern.permute.xlu0 0
    %73 = vperm.xlu0 %72, %v67
    %v74 = vpop.permute.xlu0 %73
    %77 = vset.pattern.permute.xlu0 0
    %78 = vperm.xlu0 %77, %v68
    %v79 = vpop.permute.xlu0 %78
    %82 = vset.pattern.permute.xlu0 0
    %83 = vperm.xlu0 %82, %v69
    %v84 = vpop.permute.xlu0 %83
    %87 = vset.pattern.permute.xlu0 0
    %88 = vperm.xlu0 %87, %v70
    %v89 = vpop.permute.xlu0 %88
    %vm91 = vcmask 97280
    %v93 = vsel %vm91, %v32, 0
    %v96 = vsel %vm91, %v33, 0
    %v99 = vsel %vm91, %v34, 0
    %v102 = vsel %vm91, %v35, 0
    %v105 = vsel %vm65, %v62, 0
    %107 = vmatprep.subr.mxu0 0.0
    %108 = vmatpush1.msra.mxu0 0.0
    %109 = vmatprep.subr.mxu0 0.0
    %110 = vmatpush1.msra.mxu0 0.0
    %111 = vmatprep.subr.mxu0 0.0
    %112 = vmatpush1.msra.mxu0 0.0
    %113 = vmatprep.subr.mxu0 0.0
    %114 = vmatpush1.msra.mxu0 0.0
    %115 = vmatprep.subr.mxu0 0.0
    %116 = vmatpush1.msra.mxu0 0.0
    %117 = vmatprep.subr.mxu0 0.0
    %118 = vmatpush1.msra.mxu0 0.0
    %119 = vmatprep.subr.mxu0 0.0
    %120 = vmatpush1.msra.mxu0 0.0
    %121 = vmatprep.subr.mxu0 0.0
    %122 = vmatpush1.msra.mxu0 0.0
    %123 = vmatprep.subr.mxu0 0.0
    %124 = vmatpush1.msra.mxu0 0.0
    %125 = vmatprep.subr.mxu0 0.0
    %126 = vmatpush1.msra.mxu0 0.0
    %127 = vmatprep.subr.mxu0 0.0
    %128 = vmatpush1.msra.mxu0 0.0
    %129 = vmatprep.subr.mxu0 0.0
    %130 = vmatpush1.msra.mxu0 0.0
    %131 = vmatprep.subr.mxu0 0.0
    %132 = vmatpush1.msra.mxu0 0.0
    %133 = vmatprep.subr.mxu0 0.0
    %134 = vmatpush1.msra.mxu0 0.0
    %135 = vmatprep.subr.mxu0 0.0
    %v136 = vand.u32 %v105, 4294901760
    %137 = vmatpush1.msra.mxu0 %v136
    %138 = vmatprep.subr.mxu0 0.0
    %v139 = vand.u32 %v66, 4294901760
    %140 = vmatpush1.msra.mxu0 %v139
    %141 = vmatprep.subr.mxu0 0.0
    %142 = vmatpush2.msra.mxu0 0.0
    %143 = vmatprep.subr.mxu0 0.0
    %144 = vmatpush2.msra.mxu0 0.0
    %145 = vmatprep.subr.mxu0 0.0
    %146 = vmatpush2.msra.mxu0 0.0
    %147 = vmatprep.subr.mxu0 0.0
    %148 = vmatpush2.msra.mxu0 0.0
    %149 = vmatprep.subr.mxu0 0.0
    %150 = vmatpush2.msra.mxu0 0.0
    %151 = vmatprep.subr.mxu0 0.0
    %152 = vmatpush2.msra.mxu0 0.0
    %153 = vmatprep.subr.mxu0 0.0
    %154 = vmatpush2.msra.mxu0 0.0
    %155 = vmatprep.subr.mxu0 0.0
    %156 = vmatpush2.msra.mxu0 0.0
    %157 = vmatprep.subr.mxu0 0.0
    %158 = vmatpush2.msra.mxu0 0.0
    %159 = vmatprep.subr.mxu0 0.0
    %160 = vmatpush2.msra.mxu0 0.0
    %161 = vmatprep.subr.mxu0 0.0
    %162 = vmatpush2.msra.mxu0 0.0
    %163 = vmatprep.subr.mxu0 0.0
    %164 = vmatpush2.msra.mxu0 0.0
    %165 = vmatprep.subr.mxu0 0.0
    %166 = vmatpush2.msra.mxu0 0.0
    %167 = vmatprep.subr.mxu0 0.0
    %168 = vmatpush2.msra.mxu0 0.0
    %169 = vmatprep.subr.mxu0 0.0
    %170 = vmatpush2.msra.mxu0 0.0
    %171 = vmatprep.subr.mxu0 0.0
    %172 = vmatpush2.msra.mxu0 0.0
    %173 = vmatprep.mubr.f32.mxu0 0.0
    %v174 = vand.u32 %v93, 4294901760
    %v175 = vsub.f32 %v93, %v174
    %v176 = vand.u32 %v175, 4294901760
    %v177 = vsub.f32 %v175, %v176
    %v178 = vand.u32 %v177, 4294901760
    %179 = vmatmul.mubr.f32.gmra.mxu0 %v178
    %v180 = vpop.f32.mrf.mxu0
    %v181 = vadd.f32 %v74, %v180
    %v182 = vpop.f32.mrf.mxu0
    %183 = vmatprep.mubr.f32.mxu0 0.0
    %v184 = vand.u32 %v96, 4294901760
    %v185 = vsub.f32 %v96, %v184
    %v186 = vand.u32 %v185, 4294901760
    %v187 = vsub.f32 %v185, %v186
    %v188 = vand.u32 %v187, 4294901760
    %189 = vmatmul.mubr.f32.gmra.mxu0 %v188
    %v190 = vpop.f32.mrf.mxu0
    %v191 = vadd.f32 %v79, %v190
    %v192 = vpop.f32.mrf.mxu0
    %193 = vmatprep.mubr.f32.mxu0 0.0
    %v194 = vand.u32 %v99, 4294901760
    %v195 = vsub.f32 %v99, %v194
    %v196 = vand.u32 %v195, 4294901760
    %v197 = vsub.f32 %v195, %v196
    %v198 = vand.u32 %v197, 4294901760
    %199 = vmatmul.mubr.f32.gmra.mxu0 %v198
    %v200 = vpop.f32.mrf.mxu0
    %v201 = vadd.f32 %v84, %v200
    %v202 = vpop.f32.mrf.mxu0
    %203 = vmatprep.mubr.f32.mxu0 0.0
    %v204 = vand.u32 %v102, 4294901760
    %v205 = vsub.f32 %v102, %v204
    %v206 = vand.u32 %v205, 4294901760
    %v207 = vsub.f32 %v205, %v206
    %v208 = vand.u32 %v207, 4294901760
    %209 = vmatmul.mubr.f32.gmra.mxu0 %v208
    %v210 = vpop.f32.mrf.mxu0
    %v211 = vadd.f32 %v89, %v210
    %v212 = vpop.f32.mrf.mxu0
    %213 = vdwg.mxu0
    %214 = vmatprep.subr.mxu0 0.0
    %215 = vmatpush1.msra.mxu0 0.0
    %216 = vmatprep.subr.mxu0 0.0
    %217 = vmatpush1.msra.mxu0 0.0
    %218 = vmatprep.subr.mxu0 0.0
    %219 = vmatpush1.msra.mxu0 0.0
    %220 = vmatprep.subr.mxu0 0.0
    %221 = vmatpush1.msra.mxu0 0.0
    %222 = vmatprep.subr.mxu0 0.0
    %223 = vmatpush1.msra.mxu0 0.0
    %224 = vmatprep.subr.mxu0 0.0
    %225 = vmatpush1.msra.mxu0 0.0
    %226 = vmatprep.subr.mxu0 0.0
    %227 = vmatpush1.msra.mxu0 0.0
    %228 = vmatprep.subr.mxu0 0.0
    %229 = vmatpush1.msra.mxu0 0.0
    %230 = vmatprep.subr.mxu0 0.0
    %231 = vmatpush1.msra.mxu0 0.0
    %232 = vmatprep.subr.mxu0 0.0
    %233 = vmatpush1.msra.mxu0 0.0
    %234 = vmatprep.subr.mxu0 0.0
    %235 = vmatpush1.msra.mxu0 0.0
    %236 = vmatprep.subr.mxu0 0.0
    %237 = vmatpush1.msra.mxu0 0.0
    %238 = vmatprep.subr.mxu0 0.0
    %239 = vmatpush1.msra.mxu0 0.0
    %240 = vmatprep.subr.mxu0 0.0
    %241 = vmatpush1.msra.mxu0 0.0
    %242 = vmatprep.subr.mxu0 0.0
    %v243 = vand.u32 %v105, 4294901760
    %v244 = vsub.f32 %v105, %v243
    %v245 = vand.u32 %v244, 4294901760
    %v246 = vsub.f32 %v244, %v245
    %v247 = vand.u32 %v246, 4294901760
    %248 = vmatpush1.msra.mxu0 %v247
    %249 = vmatprep.subr.mxu0 0.0
    %v250 = vand.u32 %v66, 4294901760
    %v251 = vsub.f32 %v66, %v250
    %v252 = vand.u32 %v251, 4294901760
    %v253 = vsub.f32 %v251, %v252
    %v254 = vand.u32 %v253, 4294901760
    %255 = vmatpush1.msra.mxu0 %v254
    %256 = vmatprep.subr.mxu0 0.0
    %257 = vmatpush2.msra.mxu0 0.0
    %258 = vmatprep.subr.mxu0 0.0
    %259 = vmatpush2.msra.mxu0 0.0
    %260 = vmatprep.subr.mxu0 0.0
    %261 = vmatpush2.msra.mxu0 0.0
    %262 = vmatprep.subr.mxu0 0.0
    %263 = vmatpush2.msra.mxu0 0.0
    %264 = vmatprep.subr.mxu0 0.0
    %265 = vmatpush2.msra.mxu0 0.0
    %266 = vmatprep.subr.mxu0 0.0
    %267 = vmatpush2.msra.mxu0 0.0
    %268 = vmatprep.subr.mxu0 0.0
    %269 = vmatpush2.msra.mxu0 0.0
    %270 = vmatprep.subr.mxu0 0.0
    %271 = vmatpush2.msra.mxu0 0.0
    %272 = vmatprep.subr.mxu0 0.0
    %273 = vmatpush2.msra.mxu0 0.0
    %274 = vmatprep.subr.mxu0 0.0
    %275 = vmatpush2.msra.mxu0 0.0
    %276 = vmatprep.subr.mxu0 0.0
    %277 = vmatpush2.msra.mxu0 0.0
    %278 = vmatprep.subr.mxu0 0.0
    %279 = vmatpush2.msra.mxu0 0.0
    %280 = vmatprep.subr.mxu0 0.0
    %281 = vmatpush2.msra.mxu0 0.0
    %282 = vmatprep.subr.mxu0 0.0
    %283 = vmatpush2.msra.mxu0 0.0
    %284 = vmatprep.subr.mxu0 0.0
    %285 = vmatpush2.msra.mxu0 0.0
    %286 = vmatprep.subr.mxu0 0.0
    %287 = vmatpush2.msra.mxu0 0.0
    %288 = vmatprep.mubr.f32.mxu0 0.0
    %v289 = vand.u32 %v93, 4294901760
    %290 = vmatmul.mubr.f32.gmra.mxu0 %v289
    %v291 = vpop.f32.mrf.mxu0
    %v292 = vadd.f32 %v181, %v291
    %v293 = vpop.f32.mrf.mxu0
    %294 = vmatprep.mubr.f32.mxu0 0.0
    %v295 = vand.u32 %v96, 4294901760
    %296 = vmatmul.mubr.f32.gmra.mxu0 %v295
    %v297 = vpop.f32.mrf.mxu0
    %v298 = vadd.f32 %v191, %v297
    %v299 = vpop.f32.mrf.mxu0
    %300 = vmatprep.mubr.f32.mxu0 0.0
    %v301 = vand.u32 %v99, 4294901760
    %302 = vmatmul.mubr.f32.gmra.mxu0 %v301
    %v303 = vpop.f32.mrf.mxu0
    %v304 = vadd.f32 %v201, %v303
    %v305 = vpop.f32.mrf.mxu0
    %306 = vmatprep.mubr.f32.mxu0 0.0
    %v307 = vand.u32 %v102, 4294901760
    %308 = vmatmul.mubr.f32.gmra.mxu0 %v307
    %v309 = vpop.f32.mrf.mxu0
    %v310 = vadd.f32 %v211, %v309
    %v311 = vpop.f32.mrf.mxu0
    %312 = vdwg.mxu0
    %313 = vmatprep.subr.mxu0 0.0
    %314 = vmatpush1.msra.mxu0 0.0
    %315 = vmatprep.subr.mxu0 0.0
    %316 = vmatpush1.msra.mxu0 0.0
    %317 = vmatprep.subr.mxu0 0.0
    %318 = vmatpush1.msra.mxu0 0.0
    %319 = vmatprep.subr.mxu0 0.0
    %320 = vmatpush1.msra.mxu0 0.0
    %321 = vmatprep.subr.mxu0 0.0
    %322 = vmatpush1.msra.mxu0 0.0
    %323 = vmatprep.subr.mxu0 0.0
    %324 = vmatpush1.msra.mxu0 0.0
    %325 = vmatprep.subr.mxu0 0.0
    %326 = vmatpush1.msra.mxu0 0.0
    %327 = vmatprep.subr.mxu0 0.0
    %328 = vmatpush1.msra.mxu0 0.0
    %329 = vmatprep.subr.mxu0 0.0
    %330 = vmatpush1.msra.mxu0 0.0
    %331 = vmatprep.subr.mxu0 0.0
    %332 = vmatpush1.msra.mxu0 0.0
    %333 = vmatprep.subr.mxu0 0.0
    %334 = vmatpush1.msra.mxu0 0.0
    %335 = vmatprep.subr.mxu0 0.0
    %336 = vmatpush1.msra.mxu0 0.0
    %337 = vmatprep.subr.mxu0 0.0
    %338 = vmatpush1.msra.mxu0 0.0
    %339 = vmatprep.subr.mxu0 0.0
    %340 = vmatpush1.msra.mxu0 0.0
    %341 = vmatprep.subr.mxu0 0.0
    %v342 = vand.u32 %v105, 4294901760
    %v343 = vsub.f32 %v105, %v342
    %344 = vmatpush1.msra.mxu0 %v343
    %345 = vmatprep.subr.mxu0 0.0
    %v346 = vand.u32 %v66, 4294901760
    %v347 = vsub.f32 %v66, %v346
    %348 = vmatpush1.msra.mxu0 %v347
    %349 = vmatprep.subr.mxu0 0.0
    %350 = vmatpush2.msra.mxu0 0.0
    %351 = vmatprep.subr.mxu0 0.0
    %352 = vmatpush2.msra.mxu0 0.0
    %353 = vmatprep.subr.mxu0 0.0
    %354 = vmatpush2.msra.mxu0 0.0
    %355 = vmatprep.subr.mxu0 0.0
    %356 = vmatpush2.msra.mxu0 0.0
    %357 = vmatprep.subr.mxu0 0.0
    %358 = vmatpush2.msra.mxu0 0.0
    %359 = vmatprep.subr.mxu0 0.0
    %360 = vmatpush2.msra.mxu0 0.0
    %361 = vmatprep.subr.mxu0 0.0
    %362 = vmatpush2.msra.mxu0 0.0
    %363 = vmatprep.subr.mxu0 0.0
    %364 = vmatpush2.msra.mxu0 0.0
    %365 = vmatprep.subr.mxu0 0.0
    %366 = vmatpush2.msra.mxu0 0.0
    %367 = vmatprep.subr.mxu0 0.0
    %368 = vmatpush2.msra.mxu0 0.0
    %369 = vmatprep.subr.mxu0 0.0
    %370 = vmatpush2.msra.mxu0 0.0
    %371 = vmatprep.subr.mxu0 0.0
    %372 = vmatpush2.msra.mxu0 0.0
    %373 = vmatprep.subr.mxu0 0.0
    %374 = vmatpush2.msra.mxu0 0.0
    %375 = vmatprep.subr.mxu0 0.0
    %376 = vmatpush2.msra.mxu0 0.0
    %377 = vmatprep.subr.mxu0 0.0
    %378 = vmatpush2.msra.mxu0 0.0
    %379 = vmatprep.subr.mxu0 0.0
    %380 = vmatpush2.msra.mxu0 0.0
    %381 = vmatprep.mubr.f32.mxu0 0.0
    %v382 = vand.u32 %v93, 4294901760
    %v383 = vsub.f32 %v93, %v382
    %384 = vmatmul.mubr.f32.gmra.mxu0 %v383
    %v385 = vpop.f32.mrf.mxu0
    %v386 = vadd.f32 %v292, %v385
    %v387 = vpop.f32.mrf.mxu0
    %388 = vmatprep.mubr.f32.mxu0 0.0
    %v389 = vand.u32 %v96, 4294901760
    %v390 = vsub.f32 %v96, %v389
    %391 = vmatmul.mubr.f32.gmra.mxu0 %v390
    %v392 = vpop.f32.mrf.mxu0
    %v393 = vadd.f32 %v298, %v392
    %v394 = vpop.f32.mrf.mxu0
    %395 = vmatprep.mubr.f32.mxu0 0.0
    %v396 = vand.u32 %v99, 4294901760
    %v397 = vsub.f32 %v99, %v396
    %398 = vmatmul.mubr.f32.gmra.mxu0 %v397
    %v399 = vpop.f32.mrf.mxu0
    %v400 = vadd.f32 %v304, %v399
    %v401 = vpop.f32.mrf.mxu0
    %402 = vmatprep.mubr.f32.mxu0 0.0
    %v403 = vand.u32 %v102, 4294901760
    %v404 = vsub.f32 %v102, %v403
    %405 = vmatmul.mubr.f32.gmra.mxu0 %v404
    %v406 = vpop.f32.mrf.mxu0
    %v407 = vadd.f32 %v310, %v406
    %v408 = vpop.f32.mrf.mxu0
    %409 = vdwg.mxu0
    %410 = vmatprep.subr.mxu0 0.0
    %411 = vmatpush1.msra.mxu0 0.0
    %412 = vmatprep.subr.mxu0 0.0
    %413 = vmatpush1.msra.mxu0 0.0
    %414 = vmatprep.subr.mxu0 0.0
    %415 = vmatpush1.msra.mxu0 0.0
    %416 = vmatprep.subr.mxu0 0.0
    %417 = vmatpush1.msra.mxu0 0.0
    %418 = vmatprep.subr.mxu0 0.0
    %419 = vmatpush1.msra.mxu0 0.0
    %420 = vmatprep.subr.mxu0 0.0
    %421 = vmatpush1.msra.mxu0 0.0
    %422 = vmatprep.subr.mxu0 0.0
    %423 = vmatpush1.msra.mxu0 0.0
    %424 = vmatprep.subr.mxu0 0.0
    %425 = vmatpush1.msra.mxu0 0.0
    %426 = vmatprep.subr.mxu0 0.0
    %427 = vmatpush1.msra.mxu0 0.0
    %428 = vmatprep.subr.mxu0 0.0
    %429 = vmatpush1.msra.mxu0 0.0
    %430 = vmatprep.subr.mxu0 0.0
    %431 = vmatpush1.msra.mxu0 0.0
    %432 = vmatprep.subr.mxu0 0.0
    %433 = vmatpush1.msra.mxu0 0.0
    %434 = vmatprep.subr.mxu0 0.0
    %435 = vmatpush1.msra.mxu0 0.0
    %436 = vmatprep.subr.mxu0 0.0
    %437 = vmatpush1.msra.mxu0 0.0
    %438 = vmatprep.subr.mxu0 0.0
    %v439 = vand.u32 %v105, 4294901760
    %440 = vmatpush1.msra.mxu0 %v439
    %441 = vmatprep.subr.mxu0 0.0
    %v442 = vand.u32 %v66, 4294901760
    %443 = vmatpush1.msra.mxu0 %v442
    %444 = vmatprep.subr.mxu0 0.0
    %445 = vmatpush2.msra.mxu0 0.0
    %446 = vmatprep.subr.mxu0 0.0
    %447 = vmatpush2.msra.mxu0 0.0
    %448 = vmatprep.subr.mxu0 0.0
    %449 = vmatpush2.msra.mxu0 0.0
    %450 = vmatprep.subr.mxu0 0.0
    %451 = vmatpush2.msra.mxu0 0.0
    %452 = vmatprep.subr.mxu0 0.0
    %453 = vmatpush2.msra.mxu0 0.0
    %454 = vmatprep.subr.mxu0 0.0
    %455 = vmatpush2.msra.mxu0 0.0
    %456 = vmatprep.subr.mxu0 0.0
    %457 = vmatpush2.msra.mxu0 0.0
    %458 = vmatprep.subr.mxu0 0.0
    %459 = vmatpush2.msra.mxu0 0.0
    %460 = vmatprep.subr.mxu0 0.0
    %461 = vmatpush2.msra.mxu0 0.0
    %462 = vmatprep.subr.mxu0 0.0
    %463 = vmatpush2.msra.mxu0 0.0
    %464 = vmatprep.subr.mxu0 0.0
    %465 = vmatpush2.msra.mxu0 0.0
    %466 = vmatprep.subr.mxu0 0.0
    %467 = vmatpush2.msra.mxu0 0.0
    %468 = vmatprep.subr.mxu0 0.0
    %469 = vmatpush2.msra.mxu0 0.0
    %470 = vmatprep.subr.mxu0 0.0
    %471 = vmatpush2.msra.mxu0 0.0
    %472 = vmatprep.subr.mxu0 0.0
    %473 = vmatpush2.msra.mxu0 0.0
    %474 = vmatprep.subr.mxu0 0.0
    %475 = vmatpush2.msra.mxu0 0.0
    %476 = vmatprep.mubr.f32.mxu0 0.0
    %v477 = vand.u32 %v93, 4294901760
    %v478 = vsub.f32 %v93, %v477
    %v479 = vand.u32 %v478, 4294901760
    %480 = vmatmul.mubr.f32.gmra.mxu0 %v479
    %v481 = vpop.f32.mrf.mxu0
    %v482 = vadd.f32 %v386, %v481
    %v483 = vpop.f32.mrf.mxu0
    %484 = vmatprep.mubr.f32.mxu0 0.0
    %v485 = vand.u32 %v96, 4294901760
    %v486 = vsub.f32 %v96, %v485
    %v487 = vand.u32 %v486, 4294901760
    %488 = vmatmul.mubr.f32.gmra.mxu0 %v487
    %v489 = vpop.f32.mrf.mxu0
    %v490 = vadd.f32 %v393, %v489
    %v491 = vpop.f32.mrf.mxu0
    %492 = vmatprep.mubr.f32.mxu0 0.0
    %v493 = vand.u32 %v99, 4294901760
    %v494 = vsub.f32 %v99, %v493
    %v495 = vand.u32 %v494, 4294901760
    %496 = vmatmul.mubr.f32.gmra.mxu0 %v495
    %v497 = vpop.f32.mrf.mxu0
    %v498 = vadd.f32 %v400, %v497
    %v499 = vpop.f32.mrf.mxu0
    %500 = vmatprep.mubr.f32.mxu0 0.0
    %v501 = vand.u32 %v102, 4294901760
    %v502 = vsub.f32 %v102, %v501
    %v503 = vand.u32 %v502, 4294901760
    %504 = vmatmul.mubr.f32.gmra.mxu0 %v503
    %v505 = vpop.f32.mrf.mxu0
    %v506 = vadd.f32 %v407, %v505
    %v507 = vpop.f32.mrf.mxu0
    %508 = vdwg.mxu0
    %509 = vmatprep.subr.mxu0 0.0
    %510 = vmatpush1.msra.mxu0 0.0
    %511 = vmatprep.subr.mxu0 0.0
    %512 = vmatpush1.msra.mxu0 0.0
    %513 = vmatprep.subr.mxu0 0.0
    %514 = vmatpush1.msra.mxu0 0.0
    %515 = vmatprep.subr.mxu0 0.0
    %516 = vmatpush1.msra.mxu0 0.0
    %517 = vmatprep.subr.mxu0 0.0
    %518 = vmatpush1.msra.mxu0 0.0
    %519 = vmatprep.subr.mxu0 0.0
    %520 = vmatpush1.msra.mxu0 0.0
    %521 = vmatprep.subr.mxu0 0.0
    %522 = vmatpush1.msra.mxu0 0.0
    %523 = vmatprep.subr.mxu0 0.0
    %524 = vmatpush1.msra.mxu0 0.0
    %525 = vmatprep.subr.mxu0 0.0
    %526 = vmatpush1.msra.mxu0 0.0
    %527 = vmatprep.subr.mxu0 0.0
    %528 = vmatpush1.msra.mxu0 0.0
    %529 = vmatprep.subr.mxu0 0.0
    %530 = vmatpush1.msra.mxu0 0.0
    %531 = vmatprep.subr.mxu0 0.0
    %532 = vmatpush1.msra.mxu0 0.0
    %533 = vmatprep.subr.mxu0 0.0
    %534 = vmatpush1.msra.mxu0 0.0
    %535 = vmatprep.subr.mxu0 0.0
    %536 = vmatpush1.msra.mxu0 0.0
    %537 = vmatprep.subr.mxu0 0.0
    %v538 = vand.u32 %v105, 4294901760
    %v539 = vsub.f32 %v105, %v538
    %v540 = vand.u32 %v539, 4294901760
    %541 = vmatpush1.msra.mxu0 %v540
    %542 = vmatprep.subr.mxu0 0.0
    %v543 = vand.u32 %v66, 4294901760
    %v544 = vsub.f32 %v66, %v543
    %v545 = vand.u32 %v544, 4294901760
    %546 = vmatpush1.msra.mxu0 %v545
    %547 = vmatprep.subr.mxu0 0.0
    %548 = vmatpush2.msra.mxu0 0.0
    %549 = vmatprep.subr.mxu0 0.0
    %550 = vmatpush2.msra.mxu0 0.0
    %551 = vmatprep.subr.mxu0 0.0
    %552 = vmatpush2.msra.mxu0 0.0
    %553 = vmatprep.subr.mxu0 0.0
    %554 = vmatpush2.msra.mxu0 0.0
    %555 = vmatprep.subr.mxu0 0.0
    %556 = vmatpush2.msra.mxu0 0.0
    %557 = vmatprep.subr.mxu0 0.0
    %558 = vmatpush2.msra.mxu0 0.0
    %559 = vmatprep.subr.mxu0 0.0
    %560 = vmatpush2.msra.mxu0 0.0
    %561 = vmatprep.subr.mxu0 0.0
    %562 = vmatpush2.msra.mxu0 0.0
    %563 = vmatprep.subr.mxu0 0.0
    %564 = vmatpush2.msra.mxu0 0.0
    %565 = vmatprep.subr.mxu0 0.0
    %566 = vmatpush2.msra.mxu0 0.0
    %567 = vmatprep.subr.mxu0 0.0
    %568 = vmatpush2.msra.mxu0 0.0
    %569 = vmatprep.subr.mxu0 0.0
    %570 = vmatpush2.msra.mxu0 0.0
    %571 = vmatprep.subr.mxu0 0.0
    %572 = vmatpush2.msra.mxu0 0.0
    %573 = vmatprep.subr.mxu0 0.0
    %574 = vmatpush2.msra.mxu0 0.0
    %575 = vmatprep.subr.mxu0 0.0
    %576 = vmatpush2.msra.mxu0 0.0
    %577 = vmatprep.subr.mxu0 0.0
    %578 = vmatpush2.msra.mxu0 0.0
    %579 = vmatprep.mubr.f32.mxu0 0.0
    %v580 = vand.u32 %v93, 4294901760
    %581 = vmatmul.mubr.f32.gmra.mxu0 %v580
    %v582 = vpop.f32.mrf.mxu0
    %v583 = vadd.f32 %v482, %v582
    %v584 = vpop.f32.mrf.mxu0
    %585 = vmatprep.mubr.f32.mxu0 0.0
    %v586 = vand.u32 %v96, 4294901760
    %587 = vmatmul.mubr.f32.gmra.mxu0 %v586
    %v588 = vpop.f32.mrf.mxu0
    %v589 = vadd.f32 %v490, %v588
    %v590 = vpop.f32.mrf.mxu0
    %591 = vmatprep.mubr.f32.mxu0 0.0
    %v592 = vand.u32 %v99, 4294901760
    %593 = vmatmul.mubr.f32.gmra.mxu0 %v592
    %v594 = vpop.f32.mrf.mxu0
    %v595 = vadd.f32 %v498, %v594
    %v596 = vpop.f32.mrf.mxu0
    %597 = vmatprep.mubr.f32.mxu0 0.0
    %v598 = vand.u32 %v102, 4294901760
    %599 = vmatmul.mubr.f32.gmra.mxu0 %v598
    %v600 = vpop.f32.mrf.mxu0
    %v601 = vadd.f32 %v506, %v600
    %v602 = vpop.f32.mrf.mxu0
    %603 = vdwg.mxu0
    %604 = vmatprep.subr.mxu0 0.0
    %605 = vmatpush1.msra.mxu0 0.0
    %606 = vmatprep.subr.mxu0 0.0
    %607 = vmatpush1.msra.mxu0 0.0
    %608 = vmatprep.subr.mxu0 0.0
    %609 = vmatpush1.msra.mxu0 0.0
    %610 = vmatprep.subr.mxu0 0.0
    %611 = vmatpush1.msra.mxu0 0.0
    %612 = vmatprep.subr.mxu0 0.0
    %613 = vmatpush1.msra.mxu0 0.0
    %614 = vmatprep.subr.mxu0 0.0
    %615 = vmatpush1.msra.mxu0 0.0
    %616 = vmatprep.subr.mxu0 0.0
    %617 = vmatpush1.msra.mxu0 0.0
    %618 = vmatprep.subr.mxu0 0.0
    %619 = vmatpush1.msra.mxu0 0.0
    %620 = vmatprep.subr.mxu0 0.0
    %621 = vmatpush1.msra.mxu0 0.0
    %622 = vmatprep.subr.mxu0 0.0
    %623 = vmatpush1.msra.mxu0 0.0
    %624 = vmatprep.subr.mxu0 0.0
    %625 = vmatpush1.msra.mxu0 0.0
    %626 = vmatprep.subr.mxu0 0.0
    %627 = vmatpush1.msra.mxu0 0.0
    %628 = vmatprep.subr.mxu0 0.0
    %629 = vmatpush1.msra.mxu0 0.0
    %630 = vmatprep.subr.mxu0 0.0
    %631 = vmatpush1.msra.mxu0 0.0
    %632 = vmatprep.subr.mxu0 0.0
    %v633 = vand.u32 %v105, 4294901760
    %634 = vmatpush1.msra.mxu0 %v633
    %635 = vmatprep.subr.mxu0 0.0
    %v636 = vand.u32 %v66, 4294901760
    %637 = vmatpush1.msra.mxu0 %v636
    %638 = vmatprep.subr.mxu0 0.0
    %639 = vmatpush2.msra.mxu0 0.0
    %640 = vmatprep.subr.mxu0 0.0
    %641 = vmatpush2.msra.mxu0 0.0
    %642 = vmatprep.subr.mxu0 0.0
    %643 = vmatpush2.msra.mxu0 0.0
    %644 = vmatprep.subr.mxu0 0.0
    %645 = vmatpush2.msra.mxu0 0.0
    %646 = vmatprep.subr.mxu0 0.0
    %647 = vmatpush2.msra.mxu0 0.0
    %648 = vmatprep.subr.mxu0 0.0
    %649 = vmatpush2.msra.mxu0 0.0
    %650 = vmatprep.subr.mxu0 0.0
    %651 = vmatpush2.msra.mxu0 0.0
    %652 = vmatprep.subr.mxu0 0.0
    %653 = vmatpush2.msra.mxu0 0.0
    %654 = vmatprep.subr.mxu0 0.0
    %655 = vmatpush2.msra.mxu0 0.0
    %656 = vmatprep.subr.mxu0 0.0
    %657 = vmatpush2.msra.mxu0 0.0
    %658 = vmatprep.subr.mxu0 0.0
    %659 = vmatpush2.msra.mxu0 0.0
    %660 = vmatprep.subr.mxu0 0.0
    %661 = vmatpush2.msra.mxu0 0.0
    %662 = vmatprep.subr.mxu0 0.0
    %663 = vmatpush2.msra.mxu0 0.0
    %664 = vmatprep.subr.mxu0 0.0
    %665 = vmatpush2.msra.mxu0 0.0
    %666 = vmatprep.subr.mxu0 0.0
    %667 = vmatpush2.msra.mxu0 0.0
    %668 = vmatprep.subr.mxu0 0.0
    %669 = vmatpush2.msra.mxu0 0.0
    %670 = vmatprep.mubr.f32.mxu0 0.0
    %v671 = vand.u32 %v93, 4294901760
    %672 = vmatmul.mubr.f32.gmra.mxu0 %v671
    %v673 = vpop.f32.mrf.mxu0
    %v674 = vadd.f32 %v583, %v673
    %v675 = vpop.f32.mrf.mxu0
    %676 = vmatprep.mubr.f32.mxu0 0.0
    %v677 = vand.u32 %v96, 4294901760
    %678 = vmatmul.mubr.f32.gmra.mxu0 %v677
    %v679 = vpop.f32.mrf.mxu0
    %v680 = vadd.f32 %v589, %v679
    %v681 = vpop.f32.mrf.mxu0
    %682 = vmatprep.mubr.f32.mxu0 0.0
    %v683 = vand.u32 %v99, 4294901760
    %684 = vmatmul.mubr.f32.gmra.mxu0 %v683
    %v685 = vpop.f32.mrf.mxu0
    %v686 = vadd.f32 %v595, %v685
    %v687 = vpop.f32.mrf.mxu0
    %688 = vmatprep.mubr.f32.mxu0 0.0
    %v689 = vand.u32 %v102, 4294901760
    %690 = vmatmul.mubr.f32.gmra.mxu0 %v689
    %v691 = vpop.f32.mrf.mxu0
    %v692 = vadd.f32 %v601, %v691
    %v693 = vpop.f32.mrf.mxu0
    %694 = vdwg.mxu0
    %v695 = vmax.f32 %v674, 0.0
    %v696 = vmax.f32 %v680, 0.0
    %v697 = vmax.f32 %v686, 0.0
    %v698 = vmax.f32 %v692, 0.0
    %v699 = vld [vmem:[%s2] sm:$0xff]
    %v700 = vld [vmem:[%s2 + $0x8] sm:$0xff]
    %v701 = vld [vmem:[%s2 + $0x10] sm:$0xff]
    %v702 = vld [vmem:[%s2 + $0x18] sm:$0xff]
    %707 = vrot.lane.b32.xlu0 %v695, 97
    %v708 = vpop.permute.xlu0 %707
    %709 = vrot.lane.b32.xlu0 %v696, 97
    %v710 = vpop.permute.xlu0 %709
    %711 = vrot.lane.b32.xlu0 %v697, 97
    %v712 = vpop.permute.xlu0 %711
    %713 = vrot.lane.b32.xlu0 %v698, 97
    %v714 = vpop.permute.xlu0 %713
    %719 = vrot.lane.b32.xlu0 %v695, 1
    %v720 = vpop.permute.xlu0 %719
    %721 = vrot.lane.b32.xlu0 %v696, 1
    %v722 = vpop.permute.xlu0 %721
    %723 = vrot.lane.b32.xlu0 %v697, 1
    %v724 = vpop.permute.xlu0 %723
    %725 = vrot.lane.b32.xlu0 %v698, 1
    %v726 = vpop.permute.xlu0 %725
    %v731 = vsel %vm43, %v708, %v720
    %v732 = vsel %vm43, %v710, %v722
    %v733 = vsel %vm43, %v712, %v724
    %v734 = vsel %vm43, %v714, %v726
    %v735 = vmul.f32 %v731, %v48
    %v736 = vmul.f32 %v732, %v48
    %v737 = vmul.f32 %v733, %v48
    %v738 = vmul.f32 %v734, %v48
    %739 = vrot.lane.b32.xlu0 %v695, 127
    %v740 = vpop.permute.xlu0 %739
    %741 = vrot.lane.b32.xlu0 %v696, 127
    %v742 = vpop.permute.xlu0 %741
    %743 = vrot.lane.b32.xlu0 %v697, 127
    %v744 = vpop.permute.xlu0 %743
    %745 = vrot.lane.b32.xlu0 %v698, 127
    %v746 = vpop.permute.xlu0 %745
    %751 = vrot.lane.b32.xlu0 %v695, 31
    %v752 = vpop.permute.xlu0 %751
    %753 = vrot.lane.b32.xlu0 %v696, 31
    %v754 = vpop.permute.xlu0 %753
    %755 = vrot.lane.b32.xlu0 %v697, 31
    %v756 = vpop.permute.xlu0 %755
    %757 = vrot.lane.b32.xlu0 %v698, 31
    %v758 = vpop.permute.xlu0 %757
    %v763 = vsel %vm56, %v740, %v752
    %v764 = vsel %vm56, %v742, %v754
    %v765 = vsel %vm56, %v744, %v756
    %v766 = vsel %vm56, %v746, %v758
    %v767 = vmul.f32 %v763, %v61
    %v768 = vmul.f32 %v764, %v61
    %v769 = vmul.f32 %v765, %v61
    %v770 = vmul.f32 %v766, %v61
    %v771 = vld [vmem:[%s5] sm:$0xff]
    %v772 = vld [vmem:[%s5 + $0x8] sm:$0xff]
    %v773 = vld [vmem:[%s5 + $0x10] sm:$0xff]
    %v774 = vld [vmem:[%s5 + $0x18] sm:$0xff]
    %776 = vset.pattern.permute.xlu0 0
    %777 = vperm.xlu0 %776, %v771
    %v778 = vpop.permute.xlu0 %777
    %781 = vset.pattern.permute.xlu0 0
    %782 = vperm.xlu0 %781, %v772
    %v783 = vpop.permute.xlu0 %782
    %786 = vset.pattern.permute.xlu0 0
    %787 = vperm.xlu0 %786, %v773
    %v788 = vpop.permute.xlu0 %787
    %791 = vset.pattern.permute.xlu0 0
    %792 = vperm.xlu0 %791, %v774
    %v793 = vpop.permute.xlu0 %792
    %vm795 = vcmask 785408
    %v797 = vsel %vm795, %v699, 0
    %v800 = vsel %vm795, %v700, 0
    %v803 = vsel %vm795, %v701, 0
    %v806 = vsel %vm795, %v702, 0
    %808 = vmatprep.subr.mxu0 0.0
    %809 = vmatpush1.msra.mxu0 0.0
    %810 = vmatprep.subr.mxu0 0.0
    %811 = vmatpush1.msra.mxu0 0.0
    %812 = vmatprep.subr.mxu0 0.0
    %813 = vmatpush1.msra.mxu0 0.0
    %814 = vmatprep.subr.mxu0 0.0
    %815 = vmatpush1.msra.mxu0 0.0
    %816 = vmatprep.subr.mxu0 0.0
    %v817 = vand.u32 %v770, 4294901760
    %818 = vmatpush1.msra.mxu0 %v817
    %819 = vmatprep.subr.mxu0 0.0
    %v820 = vand.u32 %v769, 4294901760
    %821 = vmatpush1.msra.mxu0 %v820
    %822 = vmatprep.subr.mxu0 0.0
    %v823 = vand.u32 %v768, 4294901760
    %824 = vmatpush1.msra.mxu0 %v823
    %825 = vmatprep.subr.mxu0 0.0
    %v826 = vand.u32 %v767, 4294901760
    %827 = vmatpush1.msra.mxu0 %v826
    %828 = vmatprep.subr.mxu0 0.0
    %v829 = vand.u32 %v698, 4294901760
    %830 = vmatpush1.msra.mxu0 %v829
    %831 = vmatprep.subr.mxu0 0.0
    %v832 = vand.u32 %v697, 4294901760
    %833 = vmatpush1.msra.mxu0 %v832
    %834 = vmatprep.subr.mxu0 0.0
    %v835 = vand.u32 %v696, 4294901760
    %836 = vmatpush1.msra.mxu0 %v835
    %837 = vmatprep.subr.mxu0 0.0
    %v838 = vand.u32 %v695, 4294901760
    %839 = vmatpush1.msra.mxu0 %v838
    %840 = vmatprep.subr.mxu0 0.0
    %v841 = vand.u32 %v738, 4294901760
    %842 = vmatpush1.msra.mxu0 %v841
    %843 = vmatprep.subr.mxu0 0.0
    %v844 = vand.u32 %v737, 4294901760
    %845 = vmatpush1.msra.mxu0 %v844
    %846 = vmatprep.subr.mxu0 0.0
    %v847 = vand.u32 %v736, 4294901760
    %848 = vmatpush1.msra.mxu0 %v847
    %849 = vmatprep.subr.mxu0 0.0
    %v850 = vand.u32 %v735, 4294901760
    %851 = vmatpush1.msra.mxu0 %v850
    %852 = vmatprep.subr.mxu0 0.0
    %853 = vmatpush2.msra.mxu0 0.0
    %854 = vmatprep.subr.mxu0 0.0
    %855 = vmatpush2.msra.mxu0 0.0
    %856 = vmatprep.subr.mxu0 0.0
    %857 = vmatpush2.msra.mxu0 0.0
    %858 = vmatprep.subr.mxu0 0.0
    %859 = vmatpush2.msra.mxu0 0.0
    %860 = vmatprep.subr.mxu0 0.0
    %861 = vmatpush2.msra.mxu0 0.0
    %862 = vmatprep.subr.mxu0 0.0
    %863 = vmatpush2.msra.mxu0 0.0
    %864 = vmatprep.subr.mxu0 0.0
    %865 = vmatpush2.msra.mxu0 0.0
    %866 = vmatprep.subr.mxu0 0.0
    %867 = vmatpush2.msra.mxu0 0.0
    %868 = vmatprep.subr.mxu0 0.0
    %869 = vmatpush2.msra.mxu0 0.0
    %870 = vmatprep.subr.mxu0 0.0
    %871 = vmatpush2.msra.mxu0 0.0
    %872 = vmatprep.subr.mxu0 0.0
    %873 = vmatpush2.msra.mxu0 0.0
    %874 = vmatprep.subr.mxu0 0.0
    %875 = vmatpush2.msra.mxu0 0.0
    %876 = vmatprep.subr.mxu0 0.0
    %877 = vmatpush2.msra.mxu0 0.0
    %878 = vmatprep.subr.mxu0 0.0
    %879 = vmatpush2.msra.mxu0 0.0
    %880 = vmatprep.subr.mxu0 0.0
    %881 = vmatpush2.msra.mxu0 0.0
    %882 = vmatprep.subr.mxu0 0.0
    %883 = vmatpush2.msra.mxu0 0.0
    %884 = vmatprep.mubr.f32.mxu0 0.0
    %v885 = vand.u32 %v797, 4294901760
    %v886 = vsub.f32 %v797, %v885
    %v887 = vand.u32 %v886, 4294901760
    %v888 = vsub.f32 %v886, %v887
    %v889 = vand.u32 %v888, 4294901760
    %890 = vmatmul.mubr.f32.gmra.mxu0 %v889
    %v891 = vpop.f32.mrf.mxu0
    %v892 = vadd.f32 %v778, %v891
    %v893 = vpop.f32.mrf.mxu0
    %894 = vmatprep.mubr.f32.mxu0 0.0
    %v895 = vand.u32 %v800, 4294901760
    %v896 = vsub.f32 %v800, %v895
    %v897 = vand.u32 %v896, 4294901760
    %v898 = vsub.f32 %v896, %v897
    %v899 = vand.u32 %v898, 4294901760
    %900 = vmatmul.mubr.f32.gmra.mxu0 %v899
    %v901 = vpop.f32.mrf.mxu0
    %v902 = vadd.f32 %v783, %v901
    %v903 = vpop.f32.mrf.mxu0
    %904 = vmatprep.mubr.f32.mxu0 0.0
    %v905 = vand.u32 %v803, 4294901760
    %v906 = vsub.f32 %v803, %v905
    %v907 = vand.u32 %v906, 4294901760
    %v908 = vsub.f32 %v906, %v907
    %v909 = vand.u32 %v908, 4294901760
    %910 = vmatmul.mubr.f32.gmra.mxu0 %v909
    %v911 = vpop.f32.mrf.mxu0
    %v912 = vadd.f32 %v788, %v911
    %v913 = vpop.f32.mrf.mxu0
    %914 = vmatprep.mubr.f32.mxu0 0.0
    %v915 = vand.u32 %v806, 4294901760
    %v916 = vsub.f32 %v806, %v915
    %v917 = vand.u32 %v916, 4294901760
    %v918 = vsub.f32 %v916, %v917
    %v919 = vand.u32 %v918, 4294901760
    %920 = vmatmul.mubr.f32.gmra.mxu0 %v919
    %v921 = vpop.f32.mrf.mxu0
    %v922 = vadd.f32 %v793, %v921
    %v923 = vpop.f32.mrf.mxu0
    %924 = vdwg.mxu0
    %925 = vmatprep.subr.mxu0 0.0
    %926 = vmatpush1.msra.mxu0 0.0
    %927 = vmatprep.subr.mxu0 0.0
    %928 = vmatpush1.msra.mxu0 0.0
    %929 = vmatprep.subr.mxu0 0.0
    %930 = vmatpush1.msra.mxu0 0.0
    %931 = vmatprep.subr.mxu0 0.0
    %932 = vmatpush1.msra.mxu0 0.0
    %933 = vmatprep.subr.mxu0 0.0
    %v934 = vand.u32 %v770, 4294901760
    %v935 = vsub.f32 %v770, %v934
    %v936 = vand.u32 %v935, 4294901760
    %v937 = vsub.f32 %v935, %v936
    %v938 = vand.u32 %v937, 4294901760
    %939 = vmatpush1.msra.mxu0 %v938
    %940 = vmatprep.subr.mxu0 0.0
    %v941 = vand.u32 %v769, 4294901760
    %v942 = vsub.f32 %v769, %v941
    %v943 = vand.u32 %v942, 4294901760
    %v944 = vsub.f32 %v942, %v943
    %v945 = vand.u32 %v944, 4294901760
    %946 = vmatpush1.msra.mxu0 %v945
    %947 = vmatprep.subr.mxu0 0.0
    %v948 = vand.u32 %v768, 4294901760
    %v949 = vsub.f32 %v768, %v948
    %v950 = vand.u32 %v949, 4294901760
    %v951 = vsub.f32 %v949, %v950
    %v952 = vand.u32 %v951, 4294901760
    %953 = vmatpush1.msra.mxu0 %v952
    %954 = vmatprep.subr.mxu0 0.0
    %v955 = vand.u32 %v767, 4294901760
    %v956 = vsub.f32 %v767, %v955
    %v957 = vand.u32 %v956, 4294901760
    %v958 = vsub.f32 %v956, %v957
    %v959 = vand.u32 %v958, 4294901760
    %960 = vmatpush1.msra.mxu0 %v959
    %961 = vmatprep.subr.mxu0 0.0
    %v962 = vand.u32 %v698, 4294901760
    %v963 = vsub.f32 %v698, %v962
    %v964 = vand.u32 %v963, 4294901760
    %v965 = vsub.f32 %v963, %v964
    %v966 = vand.u32 %v965, 4294901760
    %967 = vmatpush1.msra.mxu0 %v966
    %968 = vmatprep.subr.mxu0 0.0
    %v969 = vand.u32 %v697, 4294901760
    %v970 = vsub.f32 %v697, %v969
    %v971 = vand.u32 %v970, 4294901760
    %v972 = vsub.f32 %v970, %v971
    %v973 = vand.u32 %v972, 4294901760
    %974 = vmatpush1.msra.mxu0 %v973
    %975 = vmatprep.subr.mxu0 0.0
    %v976 = vand.u32 %v696, 4294901760
    %v977 = vsub.f32 %v696, %v976
    %v978 = vand.u32 %v977, 4294901760
    %v979 = vsub.f32 %v977, %v978
    %v980 = vand.u32 %v979, 4294901760
    %981 = vmatpush1.msra.mxu0 %v980
    %982 = vmatprep.subr.mxu0 0.0
    %v983 = vand.u32 %v695, 4294901760
    %v984 = vsub.f32 %v695, %v983
    %v985 = vand.u32 %v984, 4294901760
    %v986 = vsub.f32 %v984, %v985
    %v987 = vand.u32 %v986, 4294901760
    %988 = vmatpush1.msra.mxu0 %v987
    %989 = vmatprep.subr.mxu0 0.0
    %v990 = vand.u32 %v738, 4294901760
    %v991 = vsub.f32 %v738, %v990
    %v992 = vand.u32 %v991, 4294901760
    %v993 = vsub.f32 %v991, %v992
    %v994 = vand.u32 %v993, 4294901760
    %995 = vmatpush1.msra.mxu0 %v994
    %996 = vmatprep.subr.mxu0 0.0
    %v997 = vand.u32 %v737, 4294901760
    %v998 = vsub.f32 %v737, %v997
    %v999 = vand.u32 %v998, 4294901760
    %v1000 = vsub.f32 %v998, %v999
    %v1001 = vand.u32 %v1000, 4294901760
    %1002 = vmatpush1.msra.mxu0 %v1001
    %1003 = vmatprep.subr.mxu0 0.0
    %v1004 = vand.u32 %v736, 4294901760
    %v1005 = vsub.f32 %v736, %v1004
    %v1006 = vand.u32 %v1005, 4294901760
    %v1007 = vsub.f32 %v1005, %v1006
    %v1008 = vand.u32 %v1007, 4294901760
    %1009 = vmatpush1.msra.mxu0 %v1008
    %1010 = vmatprep.subr.mxu0 0.0
    %v1011 = vand.u32 %v735, 4294901760
    %v1012 = vsub.f32 %v735, %v1011
    %v1013 = vand.u32 %v1012, 4294901760
    %v1014 = vsub.f32 %v1012, %v1013
    %v1015 = vand.u32 %v1014, 4294901760
    %1016 = vmatpush1.msra.mxu0 %v1015
    %1017 = vmatprep.subr.mxu0 0.0
    %1018 = vmatpush2.msra.mxu0 0.0
    %1019 = vmatprep.subr.mxu0 0.0
    %1020 = vmatpush2.msra.mxu0 0.0
    %1021 = vmatprep.subr.mxu0 0.0
    %1022 = vmatpush2.msra.mxu0 0.0
    %1023 = vmatprep.subr.mxu0 0.0
    %1024 = vmatpush2.msra.mxu0 0.0
    %1025 = vmatprep.subr.mxu0 0.0
    %1026 = vmatpush2.msra.mxu0 0.0
    %1027 = vmatprep.subr.mxu0 0.0
    %1028 = vmatpush2.msra.mxu0 0.0
    %1029 = vmatprep.subr.mxu0 0.0
    %1030 = vmatpush2.msra.mxu0 0.0
    %1031 = vmatprep.subr.mxu0 0.0
    %1032 = vmatpush2.msra.mxu0 0.0
    %1033 = vmatprep.subr.mxu0 0.0
    %1034 = vmatpush2.msra.mxu0 0.0
    %1035 = vmatprep.subr.mxu0 0.0
    %1036 = vmatpush2.msra.mxu0 0.0
    %1037 = vmatprep.subr.mxu0 0.0
    %1038 = vmatpush2.msra.mxu0 0.0
    %1039 = vmatprep.subr.mxu0 0.0
    %1040 = vmatpush2.msra.mxu0 0.0
    %1041 = vmatprep.subr.mxu0 0.0
    %1042 = vmatpush2.msra.mxu0 0.0
    %1043 = vmatprep.subr.mxu0 0.0
    %1044 = vmatpush2.msra.mxu0 0.0
    %1045 = vmatprep.subr.mxu0 0.0
    %1046 = vmatpush2.msra.mxu0 0.0
    %1047 = vmatprep.subr.mxu0 0.0
    %1048 = vmatpush2.msra.mxu0 0.0
    %1049 = vmatprep.mubr.f32.mxu0 0.0
    %v1050 = vand.u32 %v797, 4294901760
    %1051 = vmatmul.mubr.f32.gmra.mxu0 %v1050
    %v1052 = vpop.f32.mrf.mxu0
    %v1053 = vadd.f32 %v892, %v1052
    %v1054 = vpop.f32.mrf.mxu0
    %1055 = vmatprep.mubr.f32.mxu0 0.0
    %v1056 = vand.u32 %v800, 4294901760
    %1057 = vmatmul.mubr.f32.gmra.mxu0 %v1056
    %v1058 = vpop.f32.mrf.mxu0
    %v1059 = vadd.f32 %v902, %v1058
    %v1060 = vpop.f32.mrf.mxu0
    %1061 = vmatprep.mubr.f32.mxu0 0.0
    %v1062 = vand.u32 %v803, 4294901760
    %1063 = vmatmul.mubr.f32.gmra.mxu0 %v1062
    %v1064 = vpop.f32.mrf.mxu0
    %v1065 = vadd.f32 %v912, %v1064
    %v1066 = vpop.f32.mrf.mxu0
    %1067 = vmatprep.mubr.f32.mxu0 0.0
    %v1068 = vand.u32 %v806, 4294901760
    %1069 = vmatmul.mubr.f32.gmra.mxu0 %v1068
    %v1070 = vpop.f32.mrf.mxu0
    %v1071 = vadd.f32 %v922, %v1070
    %v1072 = vpop.f32.mrf.mxu0
    %1073 = vdwg.mxu0
    %1074 = vmatprep.subr.mxu0 0.0
    %1075 = vmatpush1.msra.mxu0 0.0
    %1076 = vmatprep.subr.mxu0 0.0
    %1077 = vmatpush1.msra.mxu0 0.0
    %1078 = vmatprep.subr.mxu0 0.0
    %1079 = vmatpush1.msra.mxu0 0.0
    %1080 = vmatprep.subr.mxu0 0.0
    %1081 = vmatpush1.msra.mxu0 0.0
    %1082 = vmatprep.subr.mxu0 0.0
    %v1083 = vand.u32 %v770, 4294901760
    %v1084 = vsub.f32 %v770, %v1083
    %1085 = vmatpush1.msra.mxu0 %v1084
    %1086 = vmatprep.subr.mxu0 0.0
    %v1087 = vand.u32 %v769, 4294901760
    %v1088 = vsub.f32 %v769, %v1087
    %1089 = vmatpush1.msra.mxu0 %v1088
    %1090 = vmatprep.subr.mxu0 0.0
    %v1091 = vand.u32 %v768, 4294901760
    %v1092 = vsub.f32 %v768, %v1091
    %1093 = vmatpush1.msra.mxu0 %v1092
    %1094 = vmatprep.subr.mxu0 0.0
    %v1095 = vand.u32 %v767, 4294901760
    %v1096 = vsub.f32 %v767, %v1095
    %1097 = vmatpush1.msra.mxu0 %v1096
    %1098 = vmatprep.subr.mxu0 0.0
    %v1099 = vand.u32 %v698, 4294901760
    %v1100 = vsub.f32 %v698, %v1099
    %1101 = vmatpush1.msra.mxu0 %v1100
    %1102 = vmatprep.subr.mxu0 0.0
    %v1103 = vand.u32 %v697, 4294901760
    %v1104 = vsub.f32 %v697, %v1103
    %1105 = vmatpush1.msra.mxu0 %v1104
    %1106 = vmatprep.subr.mxu0 0.0
    %v1107 = vand.u32 %v696, 4294901760
    %v1108 = vsub.f32 %v696, %v1107
    %1109 = vmatpush1.msra.mxu0 %v1108
    %1110 = vmatprep.subr.mxu0 0.0
    %v1111 = vand.u32 %v695, 4294901760
    %v1112 = vsub.f32 %v695, %v1111
    %1113 = vmatpush1.msra.mxu0 %v1112
    %1114 = vmatprep.subr.mxu0 0.0
    %v1115 = vand.u32 %v738, 4294901760
    %v1116 = vsub.f32 %v738, %v1115
    %1117 = vmatpush1.msra.mxu0 %v1116
    %1118 = vmatprep.subr.mxu0 0.0
    %v1119 = vand.u32 %v737, 4294901760
    %v1120 = vsub.f32 %v737, %v1119
    %1121 = vmatpush1.msra.mxu0 %v1120
    %1122 = vmatprep.subr.mxu0 0.0
    %v1123 = vand.u32 %v736, 4294901760
    %v1124 = vsub.f32 %v736, %v1123
    %1125 = vmatpush1.msra.mxu0 %v1124
    %1126 = vmatprep.subr.mxu0 0.0
    %v1127 = vand.u32 %v735, 4294901760
    %v1128 = vsub.f32 %v735, %v1127
    %1129 = vmatpush1.msra.mxu0 %v1128
    %1130 = vmatprep.subr.mxu0 0.0
    %1131 = vmatpush2.msra.mxu0 0.0
    %1132 = vmatprep.subr.mxu0 0.0
    %1133 = vmatpush2.msra.mxu0 0.0
    %1134 = vmatprep.subr.mxu0 0.0
    %1135 = vmatpush2.msra.mxu0 0.0
    %1136 = vmatprep.subr.mxu0 0.0
    %1137 = vmatpush2.msra.mxu0 0.0
    %1138 = vmatprep.subr.mxu0 0.0
    %1139 = vmatpush2.msra.mxu0 0.0
    %1140 = vmatprep.subr.mxu0 0.0
    %1141 = vmatpush2.msra.mxu0 0.0
    %1142 = vmatprep.subr.mxu0 0.0
    %1143 = vmatpush2.msra.mxu0 0.0
    %1144 = vmatprep.subr.mxu0 0.0
    %1145 = vmatpush2.msra.mxu0 0.0
    %1146 = vmatprep.subr.mxu0 0.0
    %1147 = vmatpush2.msra.mxu0 0.0
    %1148 = vmatprep.subr.mxu0 0.0
    %1149 = vmatpush2.msra.mxu0 0.0
    %1150 = vmatprep.subr.mxu0 0.0
    %1151 = vmatpush2.msra.mxu0 0.0
    %1152 = vmatprep.subr.mxu0 0.0
    %1153 = vmatpush2.msra.mxu0 0.0
    %1154 = vmatprep.subr.mxu0 0.0
    %1155 = vmatpush2.msra.mxu0 0.0
    %1156 = vmatprep.subr.mxu0 0.0
    %1157 = vmatpush2.msra.mxu0 0.0
    %1158 = vmatprep.subr.mxu0 0.0
    %1159 = vmatpush2.msra.mxu0 0.0
    %1160 = vmatprep.subr.mxu0 0.0
    %1161 = vmatpush2.msra.mxu0 0.0
    %1162 = vmatprep.mubr.f32.mxu0 0.0
    %v1163 = vand.u32 %v797, 4294901760
    %v1164 = vsub.f32 %v797, %v1163
    %1165 = vmatmul.mubr.f32.gmra.mxu0 %v1164
    %v1166 = vpop.f32.mrf.mxu0
    %v1167 = vadd.f32 %v1053, %v1166
    %v1168 = vpop.f32.mrf.mxu0
    %1169 = vmatprep.mubr.f32.mxu0 0.0
    %v1170 = vand.u32 %v800, 4294901760
    %v1171 = vsub.f32 %v800, %v1170
    %1172 = vmatmul.mubr.f32.gmra.mxu0 %v1171
    %v1173 = vpop.f32.mrf.mxu0
    %v1174 = vadd.f32 %v1059, %v1173
    %v1175 = vpop.f32.mrf.mxu0
    %1176 = vmatprep.mubr.f32.mxu0 0.0
    %v1177 = vand.u32 %v803, 4294901760
    %v1178 = vsub.f32 %v803, %v1177
    %1179 = vmatmul.mubr.f32.gmra.mxu0 %v1178
    %v1180 = vpop.f32.mrf.mxu0
    %v1181 = vadd.f32 %v1065, %v1180
    %v1182 = vpop.f32.mrf.mxu0
    %1183 = vmatprep.mubr.f32.mxu0 0.0
    %v1184 = vand.u32 %v806, 4294901760
    %v1185 = vsub.f32 %v806, %v1184
    %1186 = vmatmul.mubr.f32.gmra.mxu0 %v1185
    %v1187 = vpop.f32.mrf.mxu0
    %v1188 = vadd.f32 %v1071, %v1187
    %v1189 = vpop.f32.mrf.mxu0
    %1190 = vdwg.mxu0
    %1191 = vmatprep.subr.mxu0 0.0
    %1192 = vmatpush1.msra.mxu0 0.0
    %1193 = vmatprep.subr.mxu0 0.0
    %1194 = vmatpush1.msra.mxu0 0.0
    %1195 = vmatprep.subr.mxu0 0.0
    %1196 = vmatpush1.msra.mxu0 0.0
    %1197 = vmatprep.subr.mxu0 0.0
    %1198 = vmatpush1.msra.mxu0 0.0
    %1199 = vmatprep.subr.mxu0 0.0
    %v1200 = vand.u32 %v770, 4294901760
    %1201 = vmatpush1.msra.mxu0 %v1200
    %1202 = vmatprep.subr.mxu0 0.0
    %v1203 = vand.u32 %v769, 4294901760
    %1204 = vmatpush1.msra.mxu0 %v1203
    %1205 = vmatprep.subr.mxu0 0.0
    %v1206 = vand.u32 %v768, 4294901760
    %1207 = vmatpush1.msra.mxu0 %v1206
    %1208 = vmatprep.subr.mxu0 0.0
    %v1209 = vand.u32 %v767, 4294901760
    %1210 = vmatpush1.msra.mxu0 %v1209
    %1211 = vmatprep.subr.mxu0 0.0
    %v1212 = vand.u32 %v698, 4294901760
    %1213 = vmatpush1.msra.mxu0 %v1212
    %1214 = vmatprep.subr.mxu0 0.0
    %v1215 = vand.u32 %v697, 4294901760
    %1216 = vmatpush1.msra.mxu0 %v1215
    %1217 = vmatprep.subr.mxu0 0.0
    %v1218 = vand.u32 %v696, 4294901760
    %1219 = vmatpush1.msra.mxu0 %v1218
    %1220 = vmatprep.subr.mxu0 0.0
    %v1221 = vand.u32 %v695, 4294901760
    %1222 = vmatpush1.msra.mxu0 %v1221
    %1223 = vmatprep.subr.mxu0 0.0
    %v1224 = vand.u32 %v738, 4294901760
    %1225 = vmatpush1.msra.mxu0 %v1224
    %1226 = vmatprep.subr.mxu0 0.0
    %v1227 = vand.u32 %v737, 4294901760
    %1228 = vmatpush1.msra.mxu0 %v1227
    %1229 = vmatprep.subr.mxu0 0.0
    %v1230 = vand.u32 %v736, 4294901760
    %1231 = vmatpush1.msra.mxu0 %v1230
    %1232 = vmatprep.subr.mxu0 0.0
    %v1233 = vand.u32 %v735, 4294901760
    %1234 = vmatpush1.msra.mxu0 %v1233
    %1235 = vmatprep.subr.mxu0 0.0
    %1236 = vmatpush2.msra.mxu0 0.0
    %1237 = vmatprep.subr.mxu0 0.0
    %1238 = vmatpush2.msra.mxu0 0.0
    %1239 = vmatprep.subr.mxu0 0.0
    %1240 = vmatpush2.msra.mxu0 0.0
    %1241 = vmatprep.subr.mxu0 0.0
    %1242 = vmatpush2.msra.mxu0 0.0
    %1243 = vmatprep.subr.mxu0 0.0
    %1244 = vmatpush2.msra.mxu0 0.0
    %1245 = vmatprep.subr.mxu0 0.0
    %1246 = vmatpush2.msra.mxu0 0.0
    %1247 = vmatprep.subr.mxu0 0.0
    %1248 = vmatpush2.msra.mxu0 0.0
    %1249 = vmatprep.subr.mxu0 0.0
    %1250 = vmatpush2.msra.mxu0 0.0
    %1251 = vmatprep.subr.mxu0 0.0
    %1252 = vmatpush2.msra.mxu0 0.0
    %1253 = vmatprep.subr.mxu0 0.0
    %1254 = vmatpush2.msra.mxu0 0.0
    %1255 = vmatprep.subr.mxu0 0.0
    %1256 = vmatpush2.msra.mxu0 0.0
    %1257 = vmatprep.subr.mxu0 0.0
    %1258 = vmatpush2.msra.mxu0 0.0
    %1259 = vmatprep.subr.mxu0 0.0
    %1260 = vmatpush2.msra.mxu0 0.0
    %1261 = vmatprep.subr.mxu0 0.0
    %1262 = vmatpush2.msra.mxu0 0.0
    %1263 = vmatprep.subr.mxu0 0.0
    %1264 = vmatpush2.msra.mxu0 0.0
    %1265 = vmatprep.subr.mxu0 0.0
    %1266 = vmatpush2.msra.mxu0 0.0
    %1267 = vmatprep.mubr.f32.mxu0 0.0
    %v1268 = vand.u32 %v797, 4294901760
    %v1269 = vsub.f32 %v797, %v1268
    %v1270 = vand.u32 %v1269, 4294901760
    %1271 = vmatmul.mubr.f32.gmra.mxu0 %v1270
    %v1272 = vpop.f32.mrf.mxu0
    %v1273 = vadd.f32 %v1167, %v1272
    %v1274 = vpop.f32.mrf.mxu0
    %1275 = vmatprep.mubr.f32.mxu0 0.0
    %v1276 = vand.u32 %v800, 4294901760
    %v1277 = vsub.f32 %v800, %v1276
    %v1278 = vand.u32 %v1277, 4294901760
    %1279 = vmatmul.mubr.f32.gmra.mxu0 %v1278
    %v1280 = vpop.f32.mrf.mxu0
    %v1281 = vadd.f32 %v1174, %v1280
    %v1282 = vpop.f32.mrf.mxu0
    %1283 = vmatprep.mubr.f32.mxu0 0.0
    %v1284 = vand.u32 %v803, 4294901760
    %v1285 = vsub.f32 %v803, %v1284
    %v1286 = vand.u32 %v1285, 4294901760
    %1287 = vmatmul.mubr.f32.gmra.mxu0 %v1286
    %v1288 = vpop.f32.mrf.mxu0
    %v1289 = vadd.f32 %v1181, %v1288
    %v1290 = vpop.f32.mrf.mxu0
    %1291 = vmatprep.mubr.f32.mxu0 0.0
    %v1292 = vand.u32 %v806, 4294901760
    %v1293 = vsub.f32 %v806, %v1292
    %v1294 = vand.u32 %v1293, 4294901760
    %1295 = vmatmul.mubr.f32.gmra.mxu0 %v1294
    %v1296 = vpop.f32.mrf.mxu0
    %v1297 = vadd.f32 %v1188, %v1296
    %v1298 = vpop.f32.mrf.mxu0
    %1299 = vdwg.mxu0
    %1300 = vmatprep.subr.mxu0 0.0
    %1301 = vmatpush1.msra.mxu0 0.0
    %1302 = vmatprep.subr.mxu0 0.0
    %1303 = vmatpush1.msra.mxu0 0.0
    %1304 = vmatprep.subr.mxu0 0.0
    %1305 = vmatpush1.msra.mxu0 0.0
    %1306 = vmatprep.subr.mxu0 0.0
    %1307 = vmatpush1.msra.mxu0 0.0
    %1308 = vmatprep.subr.mxu0 0.0
    %v1309 = vand.u32 %v770, 4294901760
    %v1310 = vsub.f32 %v770, %v1309
    %v1311 = vand.u32 %v1310, 4294901760
    %1312 = vmatpush1.msra.mxu0 %v1311
    %1313 = vmatprep.subr.mxu0 0.0
    %v1314 = vand.u32 %v769, 4294901760
    %v1315 = vsub.f32 %v769, %v1314
    %v1316 = vand.u32 %v1315, 4294901760
    %1317 = vmatpush1.msra.mxu0 %v1316
    %1318 = vmatprep.subr.mxu0 0.0
    %v1319 = vand.u32 %v768, 4294901760
    %v1320 = vsub.f32 %v768, %v1319
    %v1321 = vand.u32 %v1320, 4294901760
    %1322 = vmatpush1.msra.mxu0 %v1321
    %1323 = vmatprep.subr.mxu0 0.0
    %v1324 = vand.u32 %v767, 4294901760
    %v1325 = vsub.f32 %v767, %v1324
    %v1326 = vand.u32 %v1325, 4294901760
    %1327 = vmatpush1.msra.mxu0 %v1326
    %1328 = vmatprep.subr.mxu0 0.0
    %v1329 = vand.u32 %v698, 4294901760
    %v1330 = vsub.f32 %v698, %v1329
    %v1331 = vand.u32 %v1330, 4294901760
    %1332 = vmatpush1.msra.mxu0 %v1331
    %1333 = vmatprep.subr.mxu0 0.0
    %v1334 = vand.u32 %v697, 4294901760
    %v1335 = vsub.f32 %v697, %v1334
    %v1336 = vand.u32 %v1335, 4294901760
    %1337 = vmatpush1.msra.mxu0 %v1336
    %1338 = vmatprep.subr.mxu0 0.0
    %v1339 = vand.u32 %v696, 4294901760
    %v1340 = vsub.f32 %v696, %v1339
    %v1341 = vand.u32 %v1340, 4294901760
    %1342 = vmatpush1.msra.mxu0 %v1341
    %1343 = vmatprep.subr.mxu0 0.0
    %v1344 = vand.u32 %v695, 4294901760
    %v1345 = vsub.f32 %v695, %v1344
    %v1346 = vand.u32 %v1345, 4294901760
    %1347 = vmatpush1.msra.mxu0 %v1346
    %1348 = vmatprep.subr.mxu0 0.0
    %v1349 = vand.u32 %v738, 4294901760
    %v1350 = vsub.f32 %v738, %v1349
    %v1351 = vand.u32 %v1350, 4294901760
    %1352 = vmatpush1.msra.mxu0 %v1351
    %1353 = vmatprep.subr.mxu0 0.0
    %v1354 = vand.u32 %v737, 4294901760
    %v1355 = vsub.f32 %v737, %v1354
    %v1356 = vand.u32 %v1355, 4294901760
    %1357 = vmatpush1.msra.mxu0 %v1356
    %1358 = vmatprep.subr.mxu0 0.0
    %v1359 = vand.u32 %v736, 4294901760
    %v1360 = vsub.f32 %v736, %v1359
    %v1361 = vand.u32 %v1360, 4294901760
    %1362 = vmatpush1.msra.mxu0 %v1361
    %1363 = vmatprep.subr.mxu0 0.0
    %v1364 = vand.u32 %v735, 4294901760
    %v1365 = vsub.f32 %v735, %v1364
    %v1366 = vand.u32 %v1365, 4294901760
    %1367 = vmatpush1.msra.mxu0 %v1366
    %1368 = vmatprep.subr.mxu0 0.0
    %1369 = vmatpush2.msra.mxu0 0.0
    %1370 = vmatprep.subr.mxu0 0.0
    %1371 = vmatpush2.msra.mxu0 0.0
    %1372 = vmatprep.subr.mxu0 0.0
    %1373 = vmatpush2.msra.mxu0 0.0
    %1374 = vmatprep.subr.mxu0 0.0
    %1375 = vmatpush2.msra.mxu0 0.0
    %1376 = vmatprep.subr.mxu0 0.0
    %1377 = vmatpush2.msra.mxu0 0.0
    %1378 = vmatprep.subr.mxu0 0.0
    %1379 = vmatpush2.msra.mxu0 0.0
    %1380 = vmatprep.subr.mxu0 0.0
    %1381 = vmatpush2.msra.mxu0 0.0
    %1382 = vmatprep.subr.mxu0 0.0
    %1383 = vmatpush2.msra.mxu0 0.0
    %1384 = vmatprep.subr.mxu0 0.0
    %1385 = vmatpush2.msra.mxu0 0.0
    %1386 = vmatprep.subr.mxu0 0.0
    %1387 = vmatpush2.msra.mxu0 0.0
    %1388 = vmatprep.subr.mxu0 0.0
    %1389 = vmatpush2.msra.mxu0 0.0
    %1390 = vmatprep.subr.mxu0 0.0
    %1391 = vmatpush2.msra.mxu0 0.0
    %1392 = vmatprep.subr.mxu0 0.0
    %1393 = vmatpush2.msra.mxu0 0.0
    %1394 = vmatprep.subr.mxu0 0.0
    %1395 = vmatpush2.msra.mxu0 0.0
    %1396 = vmatprep.subr.mxu0 0.0
    %1397 = vmatpush2.msra.mxu0 0.0
    %1398 = vmatprep.subr.mxu0 0.0
    %1399 = vmatpush2.msra.mxu0 0.0
    %1400 = vmatprep.mubr.f32.mxu0 0.0
    %v1401 = vand.u32 %v797, 4294901760
    %1402 = vmatmul.mubr.f32.gmra.mxu0 %v1401
    %v1403 = vpop.f32.mrf.mxu0
    %v1404 = vadd.f32 %v1273, %v1403
    %v1405 = vpop.f32.mrf.mxu0
    %1406 = vmatprep.mubr.f32.mxu0 0.0
    %v1407 = vand.u32 %v800, 4294901760
    %1408 = vmatmul.mubr.f32.gmra.mxu0 %v1407
    %v1409 = vpop.f32.mrf.mxu0
    %v1410 = vadd.f32 %v1281, %v1409
    %v1411 = vpop.f32.mrf.mxu0
    %1412 = vmatprep.mubr.f32.mxu0 0.0
    %v1413 = vand.u32 %v803, 4294901760
    %1414 = vmatmul.mubr.f32.gmra.mxu0 %v1413
    %v1415 = vpop.f32.mrf.mxu0
    %v1416 = vadd.f32 %v1289, %v1415
    %v1417 = vpop.f32.mrf.mxu0
    %1418 = vmatprep.mubr.f32.mxu0 0.0
    %v1419 = vand.u32 %v806, 4294901760
    %1420 = vmatmul.mubr.f32.gmra.mxu0 %v1419
    %v1421 = vpop.f32.mrf.mxu0
    %v1422 = vadd.f32 %v1297, %v1421
    %v1423 = vpop.f32.mrf.mxu0
    %1424 = vdwg.mxu0
    %1425 = vmatprep.subr.mxu0 0.0
    %1426 = vmatpush1.msra.mxu0 0.0
    %1427 = vmatprep.subr.mxu0 0.0
    %1428 = vmatpush1.msra.mxu0 0.0
    %1429 = vmatprep.subr.mxu0 0.0
    %1430 = vmatpush1.msra.mxu0 0.0
    %1431 = vmatprep.subr.mxu0 0.0
    %1432 = vmatpush1.msra.mxu0 0.0
    %1433 = vmatprep.subr.mxu0 0.0
    %v1434 = vand.u32 %v770, 4294901760
    %1435 = vmatpush1.msra.mxu0 %v1434
    %1436 = vmatprep.subr.mxu0 0.0
    %v1437 = vand.u32 %v769, 4294901760
    %1438 = vmatpush1.msra.mxu0 %v1437
    %1439 = vmatprep.subr.mxu0 0.0
    %v1440 = vand.u32 %v768, 4294901760
    %1441 = vmatpush1.msra.mxu0 %v1440
    %1442 = vmatprep.subr.mxu0 0.0
    %v1443 = vand.u32 %v767, 4294901760
    %1444 = vmatpush1.msra.mxu0 %v1443
    %1445 = vmatprep.subr.mxu0 0.0
    %v1446 = vand.u32 %v698, 4294901760
    %1447 = vmatpush1.msra.mxu0 %v1446
    %1448 = vmatprep.subr.mxu0 0.0
    %v1449 = vand.u32 %v697, 4294901760
    %1450 = vmatpush1.msra.mxu0 %v1449
    %1451 = vmatprep.subr.mxu0 0.0
    %v1452 = vand.u32 %v696, 4294901760
    %1453 = vmatpush1.msra.mxu0 %v1452
    %1454 = vmatprep.subr.mxu0 0.0
    %v1455 = vand.u32 %v695, 4294901760
    %1456 = vmatpush1.msra.mxu0 %v1455
    %1457 = vmatprep.subr.mxu0 0.0
    %v1458 = vand.u32 %v738, 4294901760
    %1459 = vmatpush1.msra.mxu0 %v1458
    %1460 = vmatprep.subr.mxu0 0.0
    %v1461 = vand.u32 %v737, 4294901760
    %1462 = vmatpush1.msra.mxu0 %v1461
    %1463 = vmatprep.subr.mxu0 0.0
    %v1464 = vand.u32 %v736, 4294901760
    %1465 = vmatpush1.msra.mxu0 %v1464
    %1466 = vmatprep.subr.mxu0 0.0
    %v1467 = vand.u32 %v735, 4294901760
    %1468 = vmatpush1.msra.mxu0 %v1467
    %1469 = vmatprep.subr.mxu0 0.0
    %1470 = vmatpush2.msra.mxu0 0.0
    %1471 = vmatprep.subr.mxu0 0.0
    %1472 = vmatpush2.msra.mxu0 0.0
    %1473 = vmatprep.subr.mxu0 0.0
    %1474 = vmatpush2.msra.mxu0 0.0
    %1475 = vmatprep.subr.mxu0 0.0
    %1476 = vmatpush2.msra.mxu0 0.0
    %1477 = vmatprep.subr.mxu0 0.0
    %1478 = vmatpush2.msra.mxu0 0.0
    %1479 = vmatprep.subr.mxu0 0.0
    %1480 = vmatpush2.msra.mxu0 0.0
    %1481 = vmatprep.subr.mxu0 0.0
    %1482 = vmatpush2.msra.mxu0 0.0
    %1483 = vmatprep.subr.mxu0 0.0
    %1484 = vmatpush2.msra.mxu0 0.0
    %1485 = vmatprep.subr.mxu0 0.0
    %1486 = vmatpush2.msra.mxu0 0.0
    %1487 = vmatprep.subr.mxu0 0.0
    %1488 = vmatpush2.msra.mxu0 0.0
    %1489 = vmatprep.subr.mxu0 0.0
    %1490 = vmatpush2.msra.mxu0 0.0
    %1491 = vmatprep.subr.mxu0 0.0
    %1492 = vmatpush2.msra.mxu0 0.0
    %1493 = vmatprep.subr.mxu0 0.0
    %1494 = vmatpush2.msra.mxu0 0.0
    %1495 = vmatprep.subr.mxu0 0.0
    %1496 = vmatpush2.msra.mxu0 0.0
    %1497 = vmatprep.subr.mxu0 0.0
    %1498 = vmatpush2.msra.mxu0 0.0
    %1499 = vmatprep.subr.mxu0 0.0
    %1500 = vmatpush2.msra.mxu0 0.0
    %1501 = vmatprep.mubr.f32.mxu0 0.0
    %v1502 = vand.u32 %v797, 4294901760
    %1503 = vmatmul.mubr.f32.gmra.mxu0 %v1502
    %v1504 = vpop.f32.mrf.mxu0
    %v1505 = vadd.f32 %v1404, %v1504
    %v1506 = vpop.f32.mrf.mxu0
    %1507 = vmatprep.mubr.f32.mxu0 0.0
    %v1508 = vand.u32 %v800, 4294901760
    %1509 = vmatmul.mubr.f32.gmra.mxu0 %v1508
    %v1510 = vpop.f32.mrf.mxu0
    %v1511 = vadd.f32 %v1410, %v1510
    %v1512 = vpop.f32.mrf.mxu0
    %1513 = vmatprep.mubr.f32.mxu0 0.0
    %v1514 = vand.u32 %v803, 4294901760
    %1515 = vmatmul.mubr.f32.gmra.mxu0 %v1514
    %v1516 = vpop.f32.mrf.mxu0
    %v1517 = vadd.f32 %v1416, %v1516
    %v1518 = vpop.f32.mrf.mxu0
    %1519 = vmatprep.mubr.f32.mxu0 0.0
    %v1520 = vand.u32 %v806, 4294901760
    %1521 = vmatmul.mubr.f32.gmra.mxu0 %v1520
    %v1522 = vpop.f32.mrf.mxu0
    %v1523 = vadd.f32 %v1422, %v1522
    %v1524 = vpop.f32.mrf.mxu0
    %1525 = vdwg.mxu0
    %v1526 = vmax.f32 %v1505, 0.0
    %v1527 = vmax.f32 %v1511, 0.0
    %v1528 = vmax.f32 %v1517, 0.0
    %v1529 = vmax.f32 %v1523, 0.0
    %v1530 = vld [vmem:[%s3] sm:$0xf]
    %1535 = vrot.lane.b32.xlu0 %v1526, 97
    %v1536 = vpop.permute.xlu0 %1535
    %1537 = vrot.lane.b32.xlu0 %v1527, 97
    %v1538 = vpop.permute.xlu0 %1537
    %1539 = vrot.lane.b32.xlu0 %v1528, 97
    %v1540 = vpop.permute.xlu0 %1539
    %1541 = vrot.lane.b32.xlu0 %v1529, 97
    %v1542 = vpop.permute.xlu0 %1541
    %1547 = vrot.lane.b32.xlu0 %v1526, 1
    %v1548 = vpop.permute.xlu0 %1547
    %1549 = vrot.lane.b32.xlu0 %v1527, 1
    %v1550 = vpop.permute.xlu0 %1549
    %1551 = vrot.lane.b32.xlu0 %v1528, 1
    %v1552 = vpop.permute.xlu0 %1551
    %1553 = vrot.lane.b32.xlu0 %v1529, 1
    %v1554 = vpop.permute.xlu0 %1553
    %v1559 = vsel %vm43, %v1536, %v1548
    %v1560 = vsel %vm43, %v1538, %v1550
    %v1561 = vsel %vm43, %v1540, %v1552
    %v1562 = vsel %vm43, %v1542, %v1554
    %v1563 = vmul.f32 %v1559, %v48
    %v1564 = vmul.f32 %v1560, %v48
    %v1565 = vmul.f32 %v1561, %v48
    %v1566 = vmul.f32 %v1562, %v48
    %1567 = vrot.lane.b32.xlu0 %v1526, 127
    %v1568 = vpop.permute.xlu0 %1567
    %1569 = vrot.lane.b32.xlu0 %v1527, 127
    %v1570 = vpop.permute.xlu0 %1569
    %1571 = vrot.lane.b32.xlu0 %v1528, 127
    %v1572 = vpop.permute.xlu0 %1571
    %1573 = vrot.lane.b32.xlu0 %v1529, 127
    %v1574 = vpop.permute.xlu0 %1573
    %1579 = vrot.lane.b32.xlu0 %v1526, 31
    %v1580 = vpop.permute.xlu0 %1579
    %1581 = vrot.lane.b32.xlu0 %v1527, 31
    %v1582 = vpop.permute.xlu0 %1581
    %1583 = vrot.lane.b32.xlu0 %v1528, 31
    %v1584 = vpop.permute.xlu0 %1583
    %1585 = vrot.lane.b32.xlu0 %v1529, 31
    %v1586 = vpop.permute.xlu0 %1585
    %v1591 = vsel %vm56, %v1568, %v1580
    %v1592 = vsel %vm56, %v1570, %v1582
    %v1593 = vsel %vm56, %v1572, %v1584
    %v1594 = vsel %vm56, %v1574, %v1586
    %v1595 = vmul.f32 %v1591, %v61
    %v1596 = vmul.f32 %v1592, %v61
    %v1597 = vmul.f32 %v1593, %v61
    %v1598 = vmul.f32 %v1594, %v61
    %v1599 = vld [vmem:[%s6] sm:$0xf]
    %1601 = vset.pattern.permute.xlu0 0
    %1602 = vperm.xlu0 %1601, %v1599
    %v1603 = vpop.permute.xlu0 %1602
    %v1606 = vsel %vm795, %v1530, 0
    %1608 = vmatprep.subr.mxu0 0.0
    %1609 = vmatpush1.msra.mxu0 0.0
    %1610 = vmatprep.subr.mxu0 0.0
    %1611 = vmatpush1.msra.mxu0 0.0
    %1612 = vmatprep.subr.mxu0 0.0
    %1613 = vmatpush1.msra.mxu0 0.0
    %1614 = vmatprep.subr.mxu0 0.0
    %1615 = vmatpush1.msra.mxu0 0.0
    %1616 = vmatprep.subr.mxu0 0.0
    %v1617 = vand.u32 %v1598, 4294901760
    %1618 = vmatpush1.msra.mxu0 %v1617
    %1619 = vmatprep.subr.mxu0 0.0
    %v1620 = vand.u32 %v1597, 4294901760
    %1621 = vmatpush1.msra.mxu0 %v1620
    %1622 = vmatprep.subr.mxu0 0.0
    %v1623 = vand.u32 %v1596, 4294901760
    %1624 = vmatpush1.msra.mxu0 %v1623
    %1625 = vmatprep.subr.mxu0 0.0
    %v1626 = vand.u32 %v1595, 4294901760
    %1627 = vmatpush1.msra.mxu0 %v1626
    %1628 = vmatprep.subr.mxu0 0.0
    %v1629 = vand.u32 %v1529, 4294901760
    %1630 = vmatpush1.msra.mxu0 %v1629
    %1631 = vmatprep.subr.mxu0 0.0
    %v1632 = vand.u32 %v1528, 4294901760
    %1633 = vmatpush1.msra.mxu0 %v1632
    %1634 = vmatprep.subr.mxu0 0.0
    %v1635 = vand.u32 %v1527, 4294901760
    %1636 = vmatpush1.msra.mxu0 %v1635
    %1637 = vmatprep.subr.mxu0 0.0
    %v1638 = vand.u32 %v1526, 4294901760
    %1639 = vmatpush1.msra.mxu0 %v1638
    %1640 = vmatprep.subr.mxu0 0.0
    %v1641 = vand.u32 %v1566, 4294901760
    %1642 = vmatpush1.msra.mxu0 %v1641
    %1643 = vmatprep.subr.mxu0 0.0
    %v1644 = vand.u32 %v1565, 4294901760
    %1645 = vmatpush1.msra.mxu0 %v1644
    %1646 = vmatprep.subr.mxu0 0.0
    %v1647 = vand.u32 %v1564, 4294901760
    %1648 = vmatpush1.msra.mxu0 %v1647
    %1649 = vmatprep.subr.mxu0 0.0
    %v1650 = vand.u32 %v1563, 4294901760
    %1651 = vmatpush1.msra.mxu0 %v1650
    %1652 = vmatprep.subr.mxu0 0.0
    %1653 = vmatpush2.msra.mxu0 0.0
    %1654 = vmatprep.subr.mxu0 0.0
    %1655 = vmatpush2.msra.mxu0 0.0
    %1656 = vmatprep.subr.mxu0 0.0
    %1657 = vmatpush2.msra.mxu0 0.0
    %1658 = vmatprep.subr.mxu0 0.0
    %1659 = vmatpush2.msra.mxu0 0.0
    %1660 = vmatprep.subr.mxu0 0.0
    %1661 = vmatpush2.msra.mxu0 0.0
    %1662 = vmatprep.subr.mxu0 0.0
    %1663 = vmatpush2.msra.mxu0 0.0
    %1664 = vmatprep.subr.mxu0 0.0
    %1665 = vmatpush2.msra.mxu0 0.0
    %1666 = vmatprep.subr.mxu0 0.0
    %1667 = vmatpush2.msra.mxu0 0.0
    %1668 = vmatprep.subr.mxu0 0.0
    %1669 = vmatpush2.msra.mxu0 0.0
    %1670 = vmatprep.subr.mxu0 0.0
    %1671 = vmatpush2.msra.mxu0 0.0
    %1672 = vmatprep.subr.mxu0 0.0
    %1673 = vmatpush2.msra.mxu0 0.0
    %1674 = vmatprep.subr.mxu0 0.0
    %1675 = vmatpush2.msra.mxu0 0.0
    %1676 = vmatprep.subr.mxu0 0.0
    %1677 = vmatpush2.msra.mxu0 0.0
    %1678 = vmatprep.subr.mxu0 0.0
    %1679 = vmatpush2.msra.mxu0 0.0
    %1680 = vmatprep.subr.mxu0 0.0
    %1681 = vmatpush2.msra.mxu0 0.0
    %1682 = vmatprep.subr.mxu0 0.0
    %1683 = vmatpush2.msra.mxu0 0.0
    %1684 = vmatprep.mubr.f32.mxu0 0.0
    %v1685 = vand.u32 %v1606, 4294901760
    %v1686 = vsub.f32 %v1606, %v1685
    %v1687 = vand.u32 %v1686, 4294901760
    %v1688 = vsub.f32 %v1686, %v1687
    %v1689 = vand.u32 %v1688, 4294901760
    %1690 = vmatmul.mubr.f32.gmra.mxu0 %v1689
    %v1691 = vpop.f32.mrf.mxu0
    %v1692 = vadd.f32 %v1603, %v1691
    %v1693 = vpop.f32.mrf.mxu0
    %1694 = vdwg.mxu0
    %1695 = vmatprep.subr.mxu0 0.0
    %1696 = vmatpush1.msra.mxu0 0.0
    %1697 = vmatprep.subr.mxu0 0.0
    %1698 = vmatpush1.msra.mxu0 0.0
    %1699 = vmatprep.subr.mxu0 0.0
    %1700 = vmatpush1.msra.mxu0 0.0
    %1701 = vmatprep.subr.mxu0 0.0
    %1702 = vmatpush1.msra.mxu0 0.0
    %1703 = vmatprep.subr.mxu0 0.0
    %v1704 = vand.u32 %v1598, 4294901760
    %v1705 = vsub.f32 %v1598, %v1704
    %v1706 = vand.u32 %v1705, 4294901760
    %v1707 = vsub.f32 %v1705, %v1706
    %v1708 = vand.u32 %v1707, 4294901760
    %1709 = vmatpush1.msra.mxu0 %v1708
    %1710 = vmatprep.subr.mxu0 0.0
    %v1711 = vand.u32 %v1597, 4294901760
    %v1712 = vsub.f32 %v1597, %v1711
    %v1713 = vand.u32 %v1712, 4294901760
    %v1714 = vsub.f32 %v1712, %v1713
    %v1715 = vand.u32 %v1714, 4294901760
    %1716 = vmatpush1.msra.mxu0 %v1715
    %1717 = vmatprep.subr.mxu0 0.0
    %v1718 = vand.u32 %v1596, 4294901760
    %v1719 = vsub.f32 %v1596, %v1718
    %v1720 = vand.u32 %v1719, 4294901760
    %v1721 = vsub.f32 %v1719, %v1720
    %v1722 = vand.u32 %v1721, 4294901760
    %1723 = vmatpush1.msra.mxu0 %v1722
    %1724 = vmatprep.subr.mxu0 0.0
    %v1725 = vand.u32 %v1595, 4294901760
    %v1726 = vsub.f32 %v1595, %v1725
    %v1727 = vand.u32 %v1726, 4294901760
    %v1728 = vsub.f32 %v1726, %v1727
    %v1729 = vand.u32 %v1728, 4294901760
    %1730 = vmatpush1.msra.mxu0 %v1729
    %1731 = vmatprep.subr.mxu0 0.0
    %v1732 = vand.u32 %v1529, 4294901760
    %v1733 = vsub.f32 %v1529, %v1732
    %v1734 = vand.u32 %v1733, 4294901760
    %v1735 = vsub.f32 %v1733, %v1734
    %v1736 = vand.u32 %v1735, 4294901760
    %1737 = vmatpush1.msra.mxu0 %v1736
    %1738 = vmatprep.subr.mxu0 0.0
    %v1739 = vand.u32 %v1528, 4294901760
    %v1740 = vsub.f32 %v1528, %v1739
    %v1741 = vand.u32 %v1740, 4294901760
    %v1742 = vsub.f32 %v1740, %v1741
    %v1743 = vand.u32 %v1742, 4294901760
    %1744 = vmatpush1.msra.mxu0 %v1743
    %1745 = vmatprep.subr.mxu0 0.0
    %v1746 = vand.u32 %v1527, 4294901760
    %v1747 = vsub.f32 %v1527, %v1746
    %v1748 = vand.u32 %v1747, 4294901760
    %v1749 = vsub.f32 %v1747, %v1748
    %v1750 = vand.u32 %v1749, 4294901760
    %1751 = vmatpush1.msra.mxu0 %v1750
    %1752 = vmatprep.subr.mxu0 0.0
    %v1753 = vand.u32 %v1526, 4294901760
    %v1754 = vsub.f32 %v1526, %v1753
    %v1755 = vand.u32 %v1754, 4294901760
    %v1756 = vsub.f32 %v1754, %v1755
    %v1757 = vand.u32 %v1756, 4294901760
    %1758 = vmatpush1.msra.mxu0 %v1757
    %1759 = vmatprep.subr.mxu0 0.0
    %v1760 = vand.u32 %v1566, 4294901760
    %v1761 = vsub.f32 %v1566, %v1760
    %v1762 = vand.u32 %v1761, 4294901760
    %v1763 = vsub.f32 %v1761, %v1762
    %v1764 = vand.u32 %v1763, 4294901760
    %1765 = vmatpush1.msra.mxu0 %v1764
    %1766 = vmatprep.subr.mxu0 0.0
    %v1767 = vand.u32 %v1565, 4294901760
    %v1768 = vsub.f32 %v1565, %v1767
    %v1769 = vand.u32 %v1768, 4294901760
    %v1770 = vsub.f32 %v1768, %v1769
    %v1771 = vand.u32 %v1770, 4294901760
    %1772 = vmatpush1.msra.mxu0 %v1771
    %1773 = vmatprep.subr.mxu0 0.0
    %v1774 = vand.u32 %v1564, 4294901760
    %v1775 = vsub.f32 %v1564, %v1774
    %v1776 = vand.u32 %v1775, 4294901760
    %v1777 = vsub.f32 %v1775, %v1776
    %v1778 = vand.u32 %v1777, 4294901760
    %1779 = vmatpush1.msra.mxu0 %v1778
    %1780 = vmatprep.subr.mxu0 0.0
    %v1781 = vand.u32 %v1563, 4294901760
    %v1782 = vsub.f32 %v1563, %v1781
    %v1783 = vand.u32 %v1782, 4294901760
    %v1784 = vsub.f32 %v1782, %v1783
    %v1785 = vand.u32 %v1784, 4294901760
    %1786 = vmatpush1.msra.mxu0 %v1785
    %1787 = vmatprep.subr.mxu0 0.0
    %1788 = vmatpush2.msra.mxu0 0.0
    %1789 = vmatprep.subr.mxu0 0.0
    %1790 = vmatpush2.msra.mxu0 0.0
    %1791 = vmatprep.subr.mxu0 0.0
    %1792 = vmatpush2.msra.mxu0 0.0
    %1793 = vmatprep.subr.mxu0 0.0
    %1794 = vmatpush2.msra.mxu0 0.0
    %1795 = vmatprep.subr.mxu0 0.0
    %1796 = vmatpush2.msra.mxu0 0.0
    %1797 = vmatprep.subr.mxu0 0.0
    %1798 = vmatpush2.msra.mxu0 0.0
    %1799 = vmatprep.subr.mxu0 0.0
    %1800 = vmatpush2.msra.mxu0 0.0
    %1801 = vmatprep.subr.mxu0 0.0
    %1802 = vmatpush2.msra.mxu0 0.0
    %1803 = vmatprep.subr.mxu0 0.0
    %1804 = vmatpush2.msra.mxu0 0.0
    %1805 = vmatprep.subr.mxu0 0.0
    %1806 = vmatpush2.msra.mxu0 0.0
    %1807 = vmatprep.subr.mxu0 0.0
    %1808 = vmatpush2.msra.mxu0 0.0
    %1809 = vmatprep.subr.mxu0 0.0
    %1810 = vmatpush2.msra.mxu0 0.0
    %1811 = vmatprep.subr.mxu0 0.0
    %1812 = vmatpush2.msra.mxu0 0.0
    %1813 = vmatprep.subr.mxu0 0.0
    %1814 = vmatpush2.msra.mxu0 0.0
    %1815 = vmatprep.subr.mxu0 0.0
    %1816 = vmatpush2.msra.mxu0 0.0
    %1817 = vmatprep.subr.mxu0 0.0
    %1818 = vmatpush2.msra.mxu0 0.0
    %1819 = vmatprep.mubr.f32.mxu0 0.0
    %v1820 = vand.u32 %v1606, 4294901760
    %1821 = vmatmul.mubr.f32.gmra.mxu0 %v1820
    %v1822 = vpop.f32.mrf.mxu0
    %v1823 = vadd.f32 %v1692, %v1822
    %v1824 = vpop.f32.mrf.mxu0
    %1825 = vdwg.mxu0
    %1826 = vmatprep.subr.mxu0 0.0
    %1827 = vmatpush1.msra.mxu0 0.0
    %1828 = vmatprep.subr.mxu0 0.0
    %1829 = vmatpush1.msra.mxu0 0.0
    %1830 = vmatprep.subr.mxu0 0.0
    %1831 = vmatpush1.msra.mxu0 0.0
    %1832 = vmatprep.subr.mxu0 0.0
    %1833 = vmatpush1.msra.mxu0 0.0
    %1834 = vmatprep.subr.mxu0 0.0
    %v1835 = vand.u32 %v1598, 4294901760
    %v1836 = vsub.f32 %v1598, %v1835
    %1837 = vmatpush1.msra.mxu0 %v1836
    %1838 = vmatprep.subr.mxu0 0.0
    %v1839 = vand.u32 %v1597, 4294901760
    %v1840 = vsub.f32 %v1597, %v1839
    %1841 = vmatpush1.msra.mxu0 %v1840
    %1842 = vmatprep.subr.mxu0 0.0
    %v1843 = vand.u32 %v1596, 4294901760
    %v1844 = vsub.f32 %v1596, %v1843
    %1845 = vmatpush1.msra.mxu0 %v1844
    %1846 = vmatprep.subr.mxu0 0.0
    %v1847 = vand.u32 %v1595, 4294901760
    %v1848 = vsub.f32 %v1595, %v1847
    %1849 = vmatpush1.msra.mxu0 %v1848
    %1850 = vmatprep.subr.mxu0 0.0
    %v1851 = vand.u32 %v1529, 4294901760
    %v1852 = vsub.f32 %v1529, %v1851
    %1853 = vmatpush1.msra.mxu0 %v1852
    %1854 = vmatprep.subr.mxu0 0.0
    %v1855 = vand.u32 %v1528, 4294901760
    %v1856 = vsub.f32 %v1528, %v1855
    %1857 = vmatpush1.msra.mxu0 %v1856
    %1858 = vmatprep.subr.mxu0 0.0
    %v1859 = vand.u32 %v1527, 4294901760
    %v1860 = vsub.f32 %v1527, %v1859
    %1861 = vmatpush1.msra.mxu0 %v1860
    %1862 = vmatprep.subr.mxu0 0.0
    %v1863 = vand.u32 %v1526, 4294901760
    %v1864 = vsub.f32 %v1526, %v1863
    %1865 = vmatpush1.msra.mxu0 %v1864
    %1866 = vmatprep.subr.mxu0 0.0
    %v1867 = vand.u32 %v1566, 4294901760
    %v1868 = vsub.f32 %v1566, %v1867
    %1869 = vmatpush1.msra.mxu0 %v1868
    %1870 = vmatprep.subr.mxu0 0.0
    %v1871 = vand.u32 %v1565, 4294901760
    %v1872 = vsub.f32 %v1565, %v1871
    %1873 = vmatpush1.msra.mxu0 %v1872
    %1874 = vmatprep.subr.mxu0 0.0
    %v1875 = vand.u32 %v1564, 4294901760
    %v1876 = vsub.f32 %v1564, %v1875
    %1877 = vmatpush1.msra.mxu0 %v1876
    %1878 = vmatprep.subr.mxu0 0.0
    %v1879 = vand.u32 %v1563, 4294901760
    %v1880 = vsub.f32 %v1563, %v1879
    %1881 = vmatpush1.msra.mxu0 %v1880
    %1882 = vmatprep.subr.mxu0 0.0
    %1883 = vmatpush2.msra.mxu0 0.0
    %1884 = vmatprep.subr.mxu0 0.0
    %1885 = vmatpush2.msra.mxu0 0.0
    %1886 = vmatprep.subr.mxu0 0.0
    %1887 = vmatpush2.msra.mxu0 0.0
    %1888 = vmatprep.subr.mxu0 0.0
    %1889 = vmatpush2.msra.mxu0 0.0
    %1890 = vmatprep.subr.mxu0 0.0
    %1891 = vmatpush2.msra.mxu0 0.0
    %1892 = vmatprep.subr.mxu0 0.0
    %1893 = vmatpush2.msra.mxu0 0.0
    %1894 = vmatprep.subr.mxu0 0.0
    %1895 = vmatpush2.msra.mxu0 0.0
    %1896 = vmatprep.subr.mxu0 0.0
    %1897 = vmatpush2.msra.mxu0 0.0
    %1898 = vmatprep.subr.mxu0 0.0
    %1899 = vmatpush2.msra.mxu0 0.0
    %1900 = vmatprep.subr.mxu0 0.0
    %1901 = vmatpush2.msra.mxu0 0.0
    %1902 = vmatprep.subr.mxu0 0.0
    %1903 = vmatpush2.msra.mxu0 0.0
    %1904 = vmatprep.subr.mxu0 0.0
    %1905 = vmatpush2.msra.mxu0 0.0
    %1906 = vmatprep.subr.mxu0 0.0
    %1907 = vmatpush2.msra.mxu0 0.0
    %1908 = vmatprep.subr.mxu0 0.0
    %1909 = vmatpush2.msra.mxu0 0.0
    %1910 = vmatprep.subr.mxu0 0.0
    %1911 = vmatpush2.msra.mxu0 0.0
    %1912 = vmatprep.subr.mxu0 0.0
    %1913 = vmatpush2.msra.mxu0 0.0
    %1914 = vmatprep.mubr.f32.mxu0 0.0
    %v1915 = vand.u32 %v1606, 4294901760
    %v1916 = vsub.f32 %v1606, %v1915
    %1917 = vmatmul.mubr.f32.gmra.mxu0 %v1916
    %v1918 = vpop.f32.mrf.mxu0
    %v1919 = vadd.f32 %v1823, %v1918
    %v1920 = vpop.f32.mrf.mxu0
    %1921 = vdwg.mxu0
    %1922 = vmatprep.subr.mxu0 0.0
    %1923 = vmatpush1.msra.mxu0 0.0
    %1924 = vmatprep.subr.mxu0 0.0
    %1925 = vmatpush1.msra.mxu0 0.0
    %1926 = vmatprep.subr.mxu0 0.0
    %1927 = vmatpush1.msra.mxu0 0.0
    %1928 = vmatprep.subr.mxu0 0.0
    %1929 = vmatpush1.msra.mxu0 0.0
    %1930 = vmatprep.subr.mxu0 0.0
    %v1931 = vand.u32 %v1598, 4294901760
    %1932 = vmatpush1.msra.mxu0 %v1931
    %1933 = vmatprep.subr.mxu0 0.0
    %v1934 = vand.u32 %v1597, 4294901760
    %1935 = vmatpush1.msra.mxu0 %v1934
    %1936 = vmatprep.subr.mxu0 0.0
    %v1937 = vand.u32 %v1596, 4294901760
    %1938 = vmatpush1.msra.mxu0 %v1937
    %1939 = vmatprep.subr.mxu0 0.0
    %v1940 = vand.u32 %v1595, 4294901760
    %1941 = vmatpush1.msra.mxu0 %v1940
    %1942 = vmatprep.subr.mxu0 0.0
    %v1943 = vand.u32 %v1529, 4294901760
    %1944 = vmatpush1.msra.mxu0 %v1943
    %1945 = vmatprep.subr.mxu0 0.0
    %v1946 = vand.u32 %v1528, 4294901760
    %1947 = vmatpush1.msra.mxu0 %v1946
    %1948 = vmatprep.subr.mxu0 0.0
    %v1949 = vand.u32 %v1527, 4294901760
    %1950 = vmatpush1.msra.mxu0 %v1949
    %1951 = vmatprep.subr.mxu0 0.0
    %v1952 = vand.u32 %v1526, 4294901760
    %1953 = vmatpush1.msra.mxu0 %v1952
    %1954 = vmatprep.subr.mxu0 0.0
    %v1955 = vand.u32 %v1566, 4294901760
    %1956 = vmatpush1.msra.mxu0 %v1955
    %1957 = vmatprep.subr.mxu0 0.0
    %v1958 = vand.u32 %v1565, 4294901760
    %1959 = vmatpush1.msra.mxu0 %v1958
    %1960 = vmatprep.subr.mxu0 0.0
    %v1961 = vand.u32 %v1564, 4294901760
    %1962 = vmatpush1.msra.mxu0 %v1961
    %1963 = vmatprep.subr.mxu0 0.0
    %v1964 = vand.u32 %v1563, 4294901760
    %1965 = vmatpush1.msra.mxu0 %v1964
    %1966 = vmatprep.subr.mxu0 0.0
    %1967 = vmatpush2.msra.mxu0 0.0
    %1968 = vmatprep.subr.mxu0 0.0
    %1969 = vmatpush2.msra.mxu0 0.0
    %1970 = vmatprep.subr.mxu0 0.0
    %1971 = vmatpush2.msra.mxu0 0.0
    %1972 = vmatprep.subr.mxu0 0.0
    %1973 = vmatpush2.msra.mxu0 0.0
    %1974 = vmatprep.subr.mxu0 0.0
    %1975 = vmatpush2.msra.mxu0 0.0
    %1976 = vmatprep.subr.mxu0 0.0
    %1977 = vmatpush2.msra.mxu0 0.0
    %1978 = vmatprep.subr.mxu0 0.0
    %1979 = vmatpush2.msra.mxu0 0.0
    %1980 = vmatprep.subr.mxu0 0.0
    %1981 = vmatpush2.msra.mxu0 0.0
    %1982 = vmatprep.subr.mxu0 0.0
    %1983 = vmatpush2.msra.mxu0 0.0
    %1984 = vmatprep.subr.mxu0 0.0
    %1985 = vmatpush2.msra.mxu0 0.0
    %1986 = vmatprep.subr.mxu0 0.0
    %1987 = vmatpush2.msra.mxu0 0.0
    %1988 = vmatprep.subr.mxu0 0.0
    %1989 = vmatpush2.msra.mxu0 0.0
    %1990 = vmatprep.subr.mxu0 0.0
    %1991 = vmatpush2.msra.mxu0 0.0
    %1992 = vmatprep.subr.mxu0 0.0
    %1993 = vmatpush2.msra.mxu0 0.0
    %1994 = vmatprep.subr.mxu0 0.0
    %1995 = vmatpush2.msra.mxu0 0.0
    %1996 = vmatprep.subr.mxu0 0.0
    %1997 = vmatpush2.msra.mxu0 0.0
    %1998 = vmatprep.mubr.f32.mxu0 0.0
    %v1999 = vand.u32 %v1606, 4294901760
    %v2000 = vsub.f32 %v1606, %v1999
    %v2001 = vand.u32 %v2000, 4294901760
    %2002 = vmatmul.mubr.f32.gmra.mxu0 %v2001
    %v2003 = vpop.f32.mrf.mxu0
    %v2004 = vadd.f32 %v1919, %v2003
    %v2005 = vpop.f32.mrf.mxu0
    %2006 = vdwg.mxu0
    %2007 = vmatprep.subr.mxu0 0.0
    %2008 = vmatpush1.msra.mxu0 0.0
    %2009 = vmatprep.subr.mxu0 0.0
    %2010 = vmatpush1.msra.mxu0 0.0
    %2011 = vmatprep.subr.mxu0 0.0
    %2012 = vmatpush1.msra.mxu0 0.0
    %2013 = vmatprep.subr.mxu0 0.0
    %2014 = vmatpush1.msra.mxu0 0.0
    %2015 = vmatprep.subr.mxu0 0.0
    %v2016 = vand.u32 %v1598, 4294901760
    %v2017 = vsub.f32 %v1598, %v2016
    %v2018 = vand.u32 %v2017, 4294901760
    %2019 = vmatpush1.msra.mxu0 %v2018
    %2020 = vmatprep.subr.mxu0 0.0
    %v2021 = vand.u32 %v1597, 4294901760
    %v2022 = vsub.f32 %v1597, %v2021
    %v2023 = vand.u32 %v2022, 4294901760
    %2024 = vmatpush1.msra.mxu0 %v2023
    %2025 = vmatprep.subr.mxu0 0.0
    %v2026 = vand.u32 %v1596, 4294901760
    %v2027 = vsub.f32 %v1596, %v2026
    %v2028 = vand.u32 %v2027, 4294901760
    %2029 = vmatpush1.msra.mxu0 %v2028
    %2030 = vmatprep.subr.mxu0 0.0
    %v2031 = vand.u32 %v1595, 4294901760
    %v2032 = vsub.f32 %v1595, %v2031
    %v2033 = vand.u32 %v2032, 4294901760
    %2034 = vmatpush1.msra.mxu0 %v2033
    %2035 = vmatprep.subr.mxu0 0.0
    %v2036 = vand.u32 %v1529, 4294901760
    %v2037 = vsub.f32 %v1529, %v2036
    %v2038 = vand.u32 %v2037, 4294901760
    %2039 = vmatpush1.msra.mxu0 %v2038
    %2040 = vmatprep.subr.mxu0 0.0
    %v2041 = vand.u32 %v1528, 4294901760
    %v2042 = vsub.f32 %v1528, %v2041
    %v2043 = vand.u32 %v2042, 4294901760
    %2044 = vmatpush1.msra.mxu0 %v2043
    %2045 = vmatprep.subr.mxu0 0.0
    %v2046 = vand.u32 %v1527, 4294901760
    %v2047 = vsub.f32 %v1527, %v2046
    %v2048 = vand.u32 %v2047, 4294901760
    %2049 = vmatpush1.msra.mxu0 %v2048
    %2050 = vmatprep.subr.mxu0 0.0
    %v2051 = vand.u32 %v1526, 4294901760
    %v2052 = vsub.f32 %v1526, %v2051
    %v2053 = vand.u32 %v2052, 4294901760
    %2054 = vmatpush1.msra.mxu0 %v2053
    %2055 = vmatprep.subr.mxu0 0.0
    %v2056 = vand.u32 %v1566, 4294901760
    %v2057 = vsub.f32 %v1566, %v2056
    %v2058 = vand.u32 %v2057, 4294901760
    %2059 = vmatpush1.msra.mxu0 %v2058
    %2060 = vmatprep.subr.mxu0 0.0
    %v2061 = vand.u32 %v1565, 4294901760
    %v2062 = vsub.f32 %v1565, %v2061
    %v2063 = vand.u32 %v2062, 4294901760
    %2064 = vmatpush1.msra.mxu0 %v2063
    %2065 = vmatprep.subr.mxu0 0.0
    %v2066 = vand.u32 %v1564, 4294901760
    %v2067 = vsub.f32 %v1564, %v2066
    %v2068 = vand.u32 %v2067, 4294901760
    %2069 = vmatpush1.msra.mxu0 %v2068
    %2070 = vmatprep.subr.mxu0 0.0
    %v2071 = vand.u32 %v1563, 4294901760
    %v2072 = vsub.f32 %v1563, %v2071
    %v2073 = vand.u32 %v2072, 4294901760
    %2074 = vmatpush1.msra.mxu0 %v2073
    %2075 = vmatprep.subr.mxu0 0.0
    %2076 = vmatpush2.msra.mxu0 0.0
    %2077 = vmatprep.subr.mxu0 0.0
    %2078 = vmatpush2.msra.mxu0 0.0
    %2079 = vmatprep.subr.mxu0 0.0
    %2080 = vmatpush2.msra.mxu0 0.0
    %2081 = vmatprep.subr.mxu0 0.0
    %2082 = vmatpush2.msra.mxu0 0.0
    %2083 = vmatprep.subr.mxu0 0.0
    %2084 = vmatpush2.msra.mxu0 0.0
    %2085 = vmatprep.subr.mxu0 0.0
    %2086 = vmatpush2.msra.mxu0 0.0
    %2087 = vmatprep.subr.mxu0 0.0
    %2088 = vmatpush2.msra.mxu0 0.0
    %2089 = vmatprep.subr.mxu0 0.0
    %2090 = vmatpush2.msra.mxu0 0.0
    %2091 = vmatprep.subr.mxu0 0.0
    %2092 = vmatpush2.msra.mxu0 0.0
    %2093 = vmatprep.subr.mxu0 0.0
    %2094 = vmatpush2.msra.mxu0 0.0
    %2095 = vmatprep.subr.mxu0 0.0
    %2096 = vmatpush2.msra.mxu0 0.0
    %2097 = vmatprep.subr.mxu0 0.0
    %2098 = vmatpush2.msra.mxu0 0.0
    %2099 = vmatprep.subr.mxu0 0.0
    %2100 = vmatpush2.msra.mxu0 0.0
    %2101 = vmatprep.subr.mxu0 0.0
    %2102 = vmatpush2.msra.mxu0 0.0
    %2103 = vmatprep.subr.mxu0 0.0
    %2104 = vmatpush2.msra.mxu0 0.0
    %2105 = vmatprep.subr.mxu0 0.0
    %2106 = vmatpush2.msra.mxu0 0.0
    %2107 = vmatprep.mubr.f32.mxu0 0.0
    %v2108 = vand.u32 %v1606, 4294901760
    %2109 = vmatmul.mubr.f32.gmra.mxu0 %v2108
    %v2110 = vpop.f32.mrf.mxu0
    %v2111 = vadd.f32 %v2004, %v2110
    %v2112 = vpop.f32.mrf.mxu0
    %2113 = vdwg.mxu0
    %2114 = vmatprep.subr.mxu0 0.0
    %2115 = vmatpush1.msra.mxu0 0.0
    %2116 = vmatprep.subr.mxu0 0.0
    %2117 = vmatpush1.msra.mxu0 0.0
    %2118 = vmatprep.subr.mxu0 0.0
    %2119 = vmatpush1.msra.mxu0 0.0
    %2120 = vmatprep.subr.mxu0 0.0
    %2121 = vmatpush1.msra.mxu0 0.0
    %2122 = vmatprep.subr.mxu0 0.0
    %v2123 = vand.u32 %v1598, 4294901760
    %2124 = vmatpush1.msra.mxu0 %v2123
    %2125 = vmatprep.subr.mxu0 0.0
    %v2126 = vand.u32 %v1597, 4294901760
    %2127 = vmatpush1.msra.mxu0 %v2126
    %2128 = vmatprep.subr.mxu0 0.0
    %v2129 = vand.u32 %v1596, 4294901760
    %2130 = vmatpush1.msra.mxu0 %v2129
    %2131 = vmatprep.subr.mxu0 0.0
    %v2132 = vand.u32 %v1595, 4294901760
    %2133 = vmatpush1.msra.mxu0 %v2132
    %2134 = vmatprep.subr.mxu0 0.0
    %v2135 = vand.u32 %v1529, 4294901760
    %2136 = vmatpush1.msra.mxu0 %v2135
    %2137 = vmatprep.subr.mxu0 0.0
    %v2138 = vand.u32 %v1528, 4294901760
    %2139 = vmatpush1.msra.mxu0 %v2138
    %2140 = vmatprep.subr.mxu0 0.0
    %v2141 = vand.u32 %v1527, 4294901760
    %2142 = vmatpush1.msra.mxu0 %v2141
    %2143 = vmatprep.subr.mxu0 0.0
    %v2144 = vand.u32 %v1526, 4294901760
    %2145 = vmatpush1.msra.mxu0 %v2144
    %2146 = vmatprep.subr.mxu0 0.0
    %v2147 = vand.u32 %v1566, 4294901760
    %2148 = vmatpush1.msra.mxu0 %v2147
    %2149 = vmatprep.subr.mxu0 0.0
    %v2150 = vand.u32 %v1565, 4294901760
    %2151 = vmatpush1.msra.mxu0 %v2150
    %2152 = vmatprep.subr.mxu0 0.0
    %v2153 = vand.u32 %v1564, 4294901760
    %2154 = vmatpush1.msra.mxu0 %v2153
    %2155 = vmatprep.subr.mxu0 0.0
    %v2156 = vand.u32 %v1563, 4294901760
    %2157 = vmatpush1.msra.mxu0 %v2156
    %2158 = vmatprep.subr.mxu0 0.0
    %2159 = vmatpush2.msra.mxu0 0.0
    %2160 = vmatprep.subr.mxu0 0.0
    %2161 = vmatpush2.msra.mxu0 0.0
    %2162 = vmatprep.subr.mxu0 0.0
    %2163 = vmatpush2.msra.mxu0 0.0
    %2164 = vmatprep.subr.mxu0 0.0
    %2165 = vmatpush2.msra.mxu0 0.0
    %2166 = vmatprep.subr.mxu0 0.0
    %2167 = vmatpush2.msra.mxu0 0.0
    %2168 = vmatprep.subr.mxu0 0.0
    %2169 = vmatpush2.msra.mxu0 0.0
    %2170 = vmatprep.subr.mxu0 0.0
    %2171 = vmatpush2.msra.mxu0 0.0
    %2172 = vmatprep.subr.mxu0 0.0
    %2173 = vmatpush2.msra.mxu0 0.0
    %2174 = vmatprep.subr.mxu0 0.0
    %2175 = vmatpush2.msra.mxu0 0.0
    %2176 = vmatprep.subr.mxu0 0.0
    %2177 = vmatpush2.msra.mxu0 0.0
    %2178 = vmatprep.subr.mxu0 0.0
    %2179 = vmatpush2.msra.mxu0 0.0
    %2180 = vmatprep.subr.mxu0 0.0
    %2181 = vmatpush2.msra.mxu0 0.0
    %2182 = vmatprep.subr.mxu0 0.0
    %2183 = vmatpush2.msra.mxu0 0.0
    %2184 = vmatprep.subr.mxu0 0.0
    %2185 = vmatpush2.msra.mxu0 0.0
    %2186 = vmatprep.subr.mxu0 0.0
    %2187 = vmatpush2.msra.mxu0 0.0
    %2188 = vmatprep.subr.mxu0 0.0
    %2189 = vmatpush2.msra.mxu0 0.0
    %2190 = vmatprep.mubr.f32.mxu0 0.0
    %v2191 = vand.u32 %v1606, 4294901760
    %2192 = vmatmul.mubr.f32.gmra.mxu0 %v2191
    %v2193 = vpop.f32.mrf.mxu0
    %v2194 = vadd.f32 %v2111, %v2193
    %v2195 = vpop.f32.mrf.mxu0
    %2196 = vdwg.mxu0
    %v2197 = vmul.f32 %v31, %v2194
    %v2199 = vrot.slane %v2197, 2
    %v2201 = vsub.f32 %v2197, %v2199
    %vm2202 = vcmask 254976
    %v2203 = vsel %vm2202, %v2201, 0.0
    %v2204 = vrot.slane %v2203, 4
    %v2205 = vadd.f32 %v2203, %v2204
    %v2206 = vrot.slane %v2205, 2
    %v2207 = vadd.f32 %v2205, %v2206
    %v2208 = vrot.slane %v2207, 1
    %v2209 = vadd.f32 %v2207, %v2208
    %v2211 = vrot.slane %v2194, 2
    %v2213 = vmul.f32 %v31, %v2211
    %v2214 = vrot.slane %v2194, 6
    %v2216 = vmul.f32 %v31, %v2214
    %v2218 = vrot.slane %v2216, 2
    %v2220 = vadd.f32 %v2213, %v2218
    %v2221 = vsel %vm2202, %v2220, 0.0
    %v2222 = vrot.slane %v2221, 4
    %v2223 = vadd.f32 %v2221, %v2222
    %v2224 = vrot.slane %v2223, 2
    %v2225 = vadd.f32 %v2223, %v2224
    %v2226 = vrot.slane %v2225, 1
    %v2227 = vadd.f32 %v2225, %v2226
    %vm2228 = vcmask 1040384
    %v2229 = vsel %vm2228, %v2209, %v2227
    %vm2230 = vcmask 123904
    %2231 = vst.msk [vmem:[#allocation2] sm:$0x3] %vm2230, %v2229
    %2233 = vrot.lane.b32.xlu0 %v2229, 112
    %v2234 = vpop.permute.xlu0 %2233
    %s2236 = scalar_lea.vmem [#allocation2], 2
    %2237 = vst.msk [vmem:[%s2236] sm:$0x3] %vm2230, %v2234
    // Predicated region
    $region34: #{complex_deep_conv1d.1} parent=1 // pred_check
      _
    $region35: #{complex_deep_conv1d.1} parent=1 // pred_check_branch
      %2239 = sbr.rel (0) target = $region37
    $region36: #{complex_deep_conv1d.1} parent=1 // pred_region
      %s2241 = ssub.s32 64, 64
      %2242 = vsyncadd [#allocation3], %s2241
      %s2243 = sshll.u32 [#allocation2], 4
      %s2244 = int_to_ptr.vmem [resolvable:$true] %s2243
      %2249 = dma.vmem_to_hbm [thread:$0]  %s2244, 64, %s8, [#allocation3], 32, 32, 2
    $region37: #{complex_deep_conv1d.1} parent=1 // pred_fallthru
      _
    // Predicated region
    $region38: #{complex_deep_conv1d.1} parent=1 // pred_check
      _
    $region39: #{complex_deep_conv1d.1} parent=1 // pred_check_branch
      %2251 = sbr.rel (0) target = $region41
    $region40: #{complex_deep_conv1d.1} parent=1 // pred_region
      %2252 = dma.done [#allocation3], 64
    $region41: #{complex_deep_conv1d.1} parent=1 // pred_fallthru
      _
    %2253 = vsyncpa [#allocation3], 1

</llo_original>
